<compile_context>
chip_gen: v6e
topology: v6e:2x2x1
jax: 0.10.0
libtpu: 0.0.40
codegen_flags: <defaults>
</compile_context>

<pallas_src>
import math
import functools

import jax
import jax.numpy as jnp
from jax.experimental import pallas as pl
from jax.experimental.pallas import tpu as pltpu


def _layer_norm(x, gamma, beta, eps=1e-5):
    # f32 vector math (safe on v5e/v6e/v7x VPUs)
    mu = jnp.mean(x, axis=-1, keepdims=True)
    xc = x - mu
    var = jnp.mean(xc * xc, axis=-1, keepdims=True)
    return xc * jax.lax.rsqrt(var + eps) * gamma + beta


def encoder_layer_kernel(xkv_ref, xres_ref,
                         wq_ref, wk_ref, wv_ref, wo_ref,
                         w1_ref, b1_ref, w2_ref, b2_ref,
                         g1_ref, be1_ref, g2_ref, be2_ref,
                         o_ref,
                         k_ref, v_ref, acc_ref,
                         *, num_heads, head_dim, ff_chunks):
    del head_dim  # shapes carry it
    qi = pl.program_id(1)

    # ---- K/V projection, head-major, cached once per batch element ----------
    # NOTE: relies on the q axis being iterated in order on a single core
    #       ("arbitrary" semantics); do NOT mark the q axis "parallel".
    @pl.when(qi == 0)
    def _():
        x_full = xkv_ref[0]                                     # (S, D) bf16

        def kv_body(h, carry):
            k_ref[h] = jnp.dot(x_full, wk_ref[h],
                               preferred_element_type=jnp.float32
                               ).astype(jnp.bfloat16)           # (S, hd)
            v_ref[h] = jnp.dot(x_full, wv_ref[h],
                               preferred_element_type=jnp.float32
                               ).astype(jnp.bfloat16)           # (S, hd)
            return carry

        jax.lax.fori_loop(0, num_heads, kv_body, 0)

    x_tile = xres_ref[0]                                        # (TQ, D) f32
    x_bf = x_tile.astype(jnp.bfloat16)

    # ---- attention: per-head fori_loop, Wo folded into the head epilogue ----
    acc_ref[...] = jnp.zeros_like(acc_ref)

    def head_body(h, carry):
        # per-tile Q projection; 1/sqrt(head_dim) is pre-folded into Wq
        q_h = jnp.dot(x_bf, wq_ref[h],
                      preferred_element_type=jnp.float32
                      ).astype(jnp.bfloat16)                    # (TQ, hd)
        # contract last dims of both operands -> no materialized K transpose
        scores = jax.lax.dot_general(
            q_h, k_ref[h], (((1,), (1,)), ((), ())),
            preferred_element_type=jnp.float32)                 # (TQ, S) f32
        m = jnp.max(scores, axis=-1, keepdims=True)
        e = jnp.exp(scores - m)
        denom = jnp.sum(e, axis=-1, keepdims=True)
        probs = (e * pl.reciprocal(denom, approx=True)).astype(jnp.bfloat16)
        ctx_h = jnp.dot(probs, v_ref[h],
                        preferred_element_type=jnp.float32
                        ).astype(jnp.bfloat16)                  # (TQ, hd)
        acc_ref[...] += jnp.dot(ctx_h, wo_ref[h],
                                preferred_element_type=jnp.float32)
        return carry

    jax.lax.fori_loop(0, num_heads, head_body, 0)

    # residual + LayerNorm 1 (dropout = identity in eval mode)
    y = _layer_norm(x_tile + acc_ref[...], g1_ref[...], be1_ref[...])
    y_bf = y.astype(jnp.bfloat16)

    # ---- feed-forward, chunked over d_ff, accumulated in the shared scratch -
    acc_ref[...] = jnp.zeros_like(acc_ref)

    def ffn_body(c, carry):
        h1 = jnp.dot(y_bf, w1_ref[c],
                     preferred_element_type=jnp.float32) + b1_ref[c]
        h1 = jnp.maximum(h1, 0.0).astype(jnp.bfloat16)
        acc_ref[...] += jnp.dot(h1, w2_ref[c],
                                preferred_element_type=jnp.float32)
        return carry

    jax.lax.fori_loop(0, ff_chunks, ffn_body, 0)

    ff = acc_ref[...] + b2_ref[...]
    # residual + LayerNorm 2; output block is lane-dense (full D on lanes)
    o_ref[0] = _layer_norm(y + ff, g2_ref[...], be2_ref[...])


# -------------------------- host-side helpers -------------------------------
def _vmem_capacity_bytes():
    try:
        return int(pltpu.get_tpu_info().vmem_capacity_bytes)
    except Exception:
        return 64 * 1024 * 1024      # conservative (v7x per-TC)


def _vmem_bytes(S, D, F, tq, fc):
    """Rough per-step VMEM estimate (weights single-buffered)."""
    bf, f32 = 2, 4
    weights = (4 * D * D + 2 * D * F) * bf + (F + 5 * D) * f32   # Wq/k/v/o, W1/W2 + biases/LN
    xio = 2 * S * D * bf + 2 * tq * D * f32 + 2 * tq * D * f32   # full-x, x tile, out tile (2 bufs)
    scratch = 2 * S * D * bf + tq * D * f32                      # K, V (bf16) + accumulator
    acts = 2 * tq * S * f32 + tq * fc * f32 + 3 * tq * D * f32   # scores/exp, h1 chunk, x/y/ff
    return weights + xio + scratch + acts


def _pick_q_tile(S, D, F, fc, cap):
    kind = ""
    try:
        kind = jax.devices()[0].device_kind.lower()
    except Exception:
        pass
    # 128-wide MXU generations are already full at TQ=128; v6e/v7x want 256
    narrow_mxu = any(t in kind for t in ("v2", "v3", "v4", "v5 lite", "v5e", "v5p"))
    pref = 128 if narrow_mxu else 256
    for t in (256, 128, 64, 32, 16, 8):
        if t <= pref and t <= S and S % t == 0 and \
           1.25 * _vmem_bytes(S, D, F, t, fc) <= 0.85 * cap:
            return t
    return S


def prepare_params(params, num_heads, ff_chunk=None):
    """One-time weight prep (fuse / reshape head-major / bf16 cast).

    Hoisted out of the per-call path so repeated encoder_layer calls do not
    re-materialize the weights in HBM.
    """
    D = params["wq"].shape[0]
    H = num_heads
    assert D % H == 0, "d_model must be divisible by num_heads"
    hd = D // H
    F = params["w1"].shape[1]
    if ff_chunk is None:
        ff_chunk = 2048 if (F > 2048 and F % 2048 == 0) else F
    assert F % ff_chunk == 0
    nfc = F // ff_chunk
    bf = jnp.bfloat16

    def head_in(w):                                   # (D, D) -> (H, D, hd)
        return w.reshape(D, H, hd).transpose(1, 0, 2).astype(bf)

    weights = dict(
        wq=head_in(params["wq"] / math.sqrt(hd)),     # scale folded into Wq
        wk=head_in(params["wk"]),
        wv=head_in(params["wv"]),
        wo=params["wo"].reshape(H, hd, D).astype(bf),              # (H, hd, D)
        w1=params["w1"].reshape(D, nfc, ff_chunk).transpose(1, 0, 2).astype(bf),  # (nfc, D, fc)
        b1=params["b1"].reshape(1, nfc, ff_chunk).transpose(1, 0, 2),             # (nfc, 1, fc) f32
        w2=params["w2"].reshape(nfc, ff_chunk, D).astype(bf),                     # (nfc, fc, D)
        b2=params["b2"],
        g1=params["g1"], be1=params["be1"],
        g2=params["g2"], be2=params["be2"],
    )
    meta = dict(num_heads=H, head_dim=hd, d_ff=F, ff_chunk=ff_chunk)
    return weights, meta


def encoder_layer(x, w, meta, q_tile=None):
    """x: (B, S, D) float32. w/meta: output of prepare_params."""
    B, S, D = x.shape
    H, hd = meta["num_heads"], meta["head_dim"]
    F, fc = meta["d_ff"], meta["ff_chunk"]
    nfc = F // fc

    cap = _vmem_capacity_bytes()
    if q_tile is None:
        q_tile = _pick_q_tile(S, D, F, fc, cap)
    assert S % q_tile == 0, "S must be divisible by the query tile"
    nq = S // q_tile

    # full-sequence copy in bf16 feeds only the K/V projection (half the bytes)
    x_bf = x.astype(jnp.bfloat16)

    kernel = functools.partial(encoder_layer_kernel,
                               num_heads=H, head_dim=hd, ff_chunks=nfc)

    def const_spec(shape):
        zeros = (0,) * len(shape)
        # resident weights: never re-DMA -> single buffer (halves their VMEM)
        return pl.BlockSpec(shape, lambda b, q: zeros,
                            pipeline_mode=pl.Buffered(1))

    vmem_limit = int(min(0.85 * cap,
                         max(1.25 * _vmem_bytes(S, D, F, q_tile, fc),
                             16 * 1024 * 1024)))

    return pl.pallas_call(
        kernel,
        out_shape=jax.ShapeDtypeStruct((B, S, D), jnp.float32),
        grid_spec=pltpu.PrefetchScalarGridSpec(
            num_scalar_prefetch=0,
            grid=(B, nq),
            in_specs=[
                pl.BlockSpec((1, S, D), lambda b, q: (b, 0, 0)),       # x bf16, full seq (K/V)
                pl.BlockSpec((1, q_tile, D), lambda b, q: (b, q, 0)),  # x f32, residual tile
                const_spec((H, D, hd)),      # Wq (head-major, scale folded)
                const_spec((H, D, hd)),      # Wk
                const_spec((H, D, hd)),      # Wv
                const_spec((H, hd, D)),      # Wo
                const_spec((nfc, D, fc)),    # W1 (d_ff-chunked)
                const_spec((nfc, 1, fc)),    # b1
                const_spec((nfc, fc, D)),    # W2
                const_spec((1, D)),          # b2
                const_spec((1, D)), const_spec((1, D)),   # LN1 gamma, beta
                const_spec((1, D)), const_spec((1, D)),   # LN2 gamma, beta
            ],
            out_specs=pl.BlockSpec((1, q_tile, D), lambda b, q: (b, q, 0)),
            scratch_shapes=[
                pltpu.VMEM((H, S, hd), jnp.bfloat16),   # cached K (head-major)
                pltpu.VMEM((H, S, hd), jnp.bfloat16),   # cached V (head-major)
                pltpu.VMEM((q_tile, D), jnp.float32),   # shared attn/FFN accumulator
            ],
        ),
        compiler_params=pltpu.CompilerParams(
            dimension_semantics=("parallel", "arbitrary"),
            vmem_limit_bytes=vmem_limit),
    )(x_bf, x,
      w["wq"], w["wk"], w["wv"], w["wo"],
      w["w1"], w["b1"], w["w2"], w["b2"],
      w["g1"], w["be1"], w["g2"], w["be2"])


# ---------------- pure-JAX reference (mirrors the PyTorch forward) ----------
def reference(x, params, num_heads):
    B, S, D = x.shape
    hd = D // num_heads

    def attn(x):
        q = x @ params["wq"]
        k = x @ params["wk"]
        v = x @ params["wv"]
        q = q.reshape(B, S, num_heads, hd).transpose(0, 2, 1, 3)
        k = k.reshape(B, S, num_heads, hd).transpose(0, 2, 1, 3)
        v = v.reshape(B, S, num_heads, hd).transpose(0, 2, 1, 3)
        scores = jnp.einsum("bhqd,bhkd->bhqk", q, k) / math.sqrt(hd)
        probs = jax.nn.softmax(scores, axis=-1)
        ctx = jnp.einsum("bhqk,bhkd->bhqd", probs, v)
        ctx = ctx.transpose(0, 2, 1, 3).reshape(B, S, D)
        return ctx @ params["wo"]

    def ln(x, g, b, eps=1e-5):
        mu = jnp.mean(x, axis=-1, keepdims=True)
        var = jnp.mean((x - mu) ** 2, axis=-1, keepdims=True)
        return (x - mu) / jnp.sqrt(var + eps) * g + b

    y = ln(x + attn(x), params["g1"], params["be1"])
    ff = jnp.maximum(y @ params["w1"] + params["b1"], 0.0) @ params["w2"] + params["b2"]
    return ln(y + ff, params["g2"], params["be2"])


if __name__ == "__main__":
    B, S, D, H, F = 2, 8, 32, 4, 64

    key = jax.random.PRNGKey(0)
    ks = jax.random.split(key, 10)
    scale = 0.1
    params = {
        # linear weights stored already transposed: (in, out)
        "wq": scale * jax.random.normal(ks[0], (D, D), jnp.float32),
        "wk": scale * jax.random.normal(ks[1], (D, D), jnp.float32),
        "wv": scale * jax.random.normal(ks[2], (D, D), jnp.float32),
        "wo": scale * jax.random.normal(ks[3], (D, D), jnp.float32),
        "w1": scale * jax.random.normal(ks[4], (D, F), jnp.float32),
        "b1": scale * jax.random.normal(ks[5], (1, F), jnp.float32),
        "w2": scale * jax.random.normal(ks[6], (F, D), jnp.float32),
        "b2": scale * jax.random.normal(ks[7], (1, D), jnp.float32),
        "g1": jnp.ones((1, D), jnp.float32),
        "be1": jnp.zeros((1, D), jnp.float32),
        "g2": jnp.ones((1, D), jnp.float32),
        "be2": jnp.zeros((1, D), jnp.float32),
    }

    x = jax.random.normal(ks[8], (B, S, D), jnp.float32)

    # one-time weight prep, hoisted out of the per-call path
    weights, meta = prepare_params(params, num_heads=H)

    out = encoder_layer(x, weights, meta)
    out = jax.block_until_ready(out)

    ref = reference(x, params, num_heads=H)
    err = float(jnp.max(jnp.abs(out - ref)))
    assert out.shape == (B, S, D)
    # bf16 matmuls + approx reciprocal => relaxed tolerance (f32 LN/softmax keeps it bounded)
    assert jnp.allclose(out, ref, atol=5e-2, rtol=5e-2), f"max err {err}"

    print("KERNEL_OK")
</pallas_src>

<mosaic_0001>
module attributes {stable_mosaic.version = 11 : i64} {
  func.func @encoder_layer_kernel(%arg0: i32, %arg1: i32, %arg2: memref<1x8x32xbf16, #tpu.memory_space<vmem>>, %arg3: memref<1x8x32xf32, #tpu.memory_space<vmem>>, %arg4: memref<4x32x8xbf16, #tpu.memory_space<vmem>>, %arg5: memref<4x32x8xbf16, #tpu.memory_space<vmem>>, %arg6: memref<4x32x8xbf16, #tpu.memory_space<vmem>>, %arg7: memref<4x8x32xbf16, #tpu.memory_space<vmem>>, %arg8: memref<1x32x64xbf16, #tpu.memory_space<vmem>>, %arg9: memref<1x1x64xf32, #tpu.memory_space<vmem>>, %arg10: memref<1x64x32xbf16, #tpu.memory_space<vmem>>, %arg11: memref<1x32xf32, #tpu.memory_space<vmem>>, %arg12: memref<1x32xf32, #tpu.memory_space<vmem>>, %arg13: memref<1x32xf32, #tpu.memory_space<vmem>>, %arg14: memref<1x32xf32, #tpu.memory_space<vmem>>, %arg15: memref<1x32xf32, #tpu.memory_space<vmem>>, %arg16: memref<1x8x32xf32, #tpu.memory_space<vmem>>, %arg17: memref<4x8x8xbf16, #tpu.memory_space<vmem>>, %arg18: memref<4x8x8xbf16, #tpu.memory_space<vmem>>, %arg19: memref<8x32xf32, #tpu.memory_space<vmem>>) attributes {dimension_semantics = [#tpu.dimension_semantics<parallel>, #tpu.dimension_semantics<arbitrary>], iteration_bounds = array<i64: 2, 1>, scalar_prefetch = 0 : i64, scratch_operands = 3 : i64, tpu.core_type = #tpu.core_type<tc>, window_params = [{transform_indices = @transform_0, window_bounds = array<i64: 1, 8, 32>}, {transform_indices = @transform_1, window_bounds = array<i64: 1, 8, 32>}, {pipeline_mode = #tpu.pipeline_mode<synchronous>, transform_indices = @transform_2, window_bounds = array<i64: 4, 32, 8>}, {pipeline_mode = #tpu.pipeline_mode<synchronous>, transform_indices = @transform_3, window_bounds = array<i64: 4, 32, 8>}, {pipeline_mode = #tpu.pipeline_mode<synchronous>, transform_indices = @transform_4, window_bounds = array<i64: 4, 32, 8>}, {pipeline_mode = #tpu.pipeline_mode<synchronous>, transform_indices = @transform_5, window_bounds = array<i64: 4, 8, 32>}, {pipeline_mode = #tpu.pipeline_mode<synchronous>, transform_indices = @transform_6, window_bounds = array<i64: 1, 32, 64>}, {pipeline_mode = #tpu.pipeline_mode<synchronous>, transform_indices = @transform_7, window_bounds = array<i64: 1, 1, 64>}, {pipeline_mode = #tpu.pipeline_mode<synchronous>, transform_indices = @transform_8, window_bounds = array<i64: 1, 64, 32>}, {pipeline_mode = #tpu.pipeline_mode<synchronous>, transform_indices = @transform_9, window_bounds = array<i64: 1, 32>}, {pipeline_mode = #tpu.pipeline_mode<synchronous>, transform_indices = @transform_10, window_bounds = array<i64: 1, 32>}, {pipeline_mode = #tpu.pipeline_mode<synchronous>, transform_indices = @transform_11, window_bounds = array<i64: 1, 32>}, {pipeline_mode = #tpu.pipeline_mode<synchronous>, transform_indices = @transform_12, window_bounds = array<i64: 1, 32>}, {pipeline_mode = #tpu.pipeline_mode<synchronous>, transform_indices = @transform_13, window_bounds = array<i64: 1, 32>}, {transform_indices = @transform_14, window_bounds = array<i64: 1, 8, 32>}]} {
    %c0_i32 = arith.constant 0 : i32
    %0 = arith.cmpi eq, %arg1, %c0_i32 : i32
    %1 = arith.extui %0 : i1 to i32
    %c0_i32_0 = arith.constant 0 : i32
    %2 = arith.cmpi ne, %1, %c0_i32_0 : i32
    scf.if %2 {
      %c0_52 = arith.constant 0 : index
      %c0_53 = arith.constant 0 : index
      %c0_54 = arith.constant 0 : index
      %85 = vector.load %arg2[%c0_52, %c0_53, %c0_54] : memref<1x8x32xbf16, #tpu.memory_space<vmem>>, vector<1x8x32xbf16>
      %86 = vector.shape_cast %85 : vector<1x8x32xbf16> to vector<8x32xbf16>
      %c0_i32_55 = arith.constant 0 : i32
      %c4_i32_56 = arith.constant 4 : i32
      %87 = arith.addi %c0_i32_55, %c4_i32_56 : i32
      %c1_i32_57 = arith.constant 1 : i32
      scf.for %arg20 = %c0_i32_55 to %87 step %c1_i32_57  : i32 {
        %88 = arith.index_cast %arg20 : i32 to index
        %c0_59 = arith.constant 0 : index
        %c0_60 = arith.constant 0 : index
        %89 = vector.load %arg5[%88, %c0_59, %c0_60] : memref<4x32x8xbf16, #tpu.memory_space<vmem>>, vector<1x32x8xbf16>
        %90 = vector.shape_cast %89 : vector<1x32x8xbf16> to vector<32x8xbf16>
        %cst_61 = arith.constant dense<0.000000e+00> : vector<8x8xf32>
        %91 = tpu.matmul %86, %90, %cst_61 {dimension_numbers = #tpu.dot_dimension_numbers<[1], [0], [0], [1], [0, 0, 1, 1], [], []>} : vector<8x32xbf16>, vector<32x8xbf16>, vector<8x8xf32> -> vector<8x8xf32>
        %92 = arith.truncf %91 : vector<8x8xf32> to vector<8x8xbf16>
        %93 = arith.index_cast %arg20 : i32 to index
        %c0_62 = arith.constant 0 : index
        %c0_63 = arith.constant 0 : index
        %94 = vector.load %arg17[%93, %c0_62, %c0_63] : memref<4x8x8xbf16, #tpu.memory_space<vmem>>, vector<1x8x8xbf16>
        %95 = vector.shape_cast %94 : vector<1x8x8xbf16> to vector<8x8xbf16>
        %96 = vector.shape_cast %92 : vector<8x8xbf16> to vector<1x8x8xbf16>
        tpu.vector_store %arg17[%93, %c0_62, %c0_63], %96 {strides = array<i32>} : memref<4x8x8xbf16, #tpu.memory_space<vmem>>, vector<1x8x8xbf16>,
        %97 = arith.index_cast %arg20 : i32 to index
        %c0_64 = arith.constant 0 : index
        %c0_65 = arith.constant 0 : index
        %98 = vector.load %arg6[%97, %c0_64, %c0_65] : memref<4x32x8xbf16, #tpu.memory_space<vmem>>, vector<1x32x8xbf16>
        %99 = vector.shape_cast %98 : vector<1x32x8xbf16> to vector<32x8xbf16>
        %cst_66 = arith.constant dense<0.000000e+00> : vector<8x8xf32>
        %100 = tpu.matmul %86, %99, %cst_66 {dimension_numbers = #tpu.dot_dimension_numbers<[1], [0], [0], [1], [0, 0, 1, 1], [], []>} : vector<8x32xbf16>, vector<32x8xbf16>, vector<8x8xf32> -> vector<8x8xf32>
        %101 = arith.truncf %100 : vector<8x8xf32> to vector<8x8xbf16>
        %102 = arith.index_cast %arg20 : i32 to index
        %c0_67 = arith.constant 0 : index
        %c0_68 = arith.constant 0 : index
        %103 = vector.load %arg18[%102, %c0_67, %c0_68] : memref<4x8x8xbf16, #tpu.memory_space<vmem>>, vector<1x8x8xbf16>
        %104 = vector.shape_cast %103 : vector<1x8x8xbf16> to vector<8x8xbf16>
        %105 = vector.shape_cast %101 : vector<8x8xbf16> to vector<1x8x8xbf16>
        tpu.vector_store %arg18[%102, %c0_67, %c0_68], %105 {strides = array<i32>} : memref<4x8x8xbf16, #tpu.memory_space<vmem>>, vector<1x8x8xbf16>,
      }
      %c4_i32_58 = arith.constant 4 : i32
    } else {
    }
    %c0 = arith.constant 0 : index
    %c0_1 = arith.constant 0 : index
    %c0_2 = arith.constant 0 : index
    %3 = vector.load %arg3[%c0, %c0_1, %c0_2] : memref<1x8x32xf32, #tpu.memory_space<vmem>>, vector<1x8x32xf32>
    %4 = vector.shape_cast %3 : vector<1x8x32xf32> to vector<8x32xf32>
    %5 = arith.truncf %4 : vector<8x32xf32> to vector<8x32xbf16>
    %cst = arith.constant 0.000000e+00 : f32
    %6 = vector.broadcast %cst : f32 to vector<8x32xf32>
    %c0_3 = arith.constant 0 : index
    %c0_4 = arith.constant 0 : index
    %7 = vector.load %arg19[%c0_3, %c0_4] : memref<8x32xf32, #tpu.memory_space<vmem>>, vector<8x32xf32>
    tpu.vector_store %arg19[%c0_3, %c0_4], %6 {strides = array<i32>} : memref<8x32xf32, #tpu.memory_space<vmem>>, vector<8x32xf32>,
    %c0_i32_5 = arith.constant 0 : i32
    %c4_i32 = arith.constant 4 : i32
    %8 = arith.addi %c0_i32_5, %c4_i32 : i32
    %c1_i32 = arith.constant 1 : i32
    scf.for %arg20 = %c0_i32_5 to %8 step %c1_i32  : i32 {
      %85 = arith.index_cast %arg20 : i32 to index
      %c0_52 = arith.constant 0 : index
      %c0_53 = arith.constant 0 : index
      %86 = vector.load %arg4[%85, %c0_52, %c0_53] : memref<4x32x8xbf16, #tpu.memory_space<vmem>>, vector<1x32x8xbf16>
      %87 = vector.shape_cast %86 : vector<1x32x8xbf16> to vector<32x8xbf16>
      %cst_54 = arith.constant dense<0.000000e+00> : vector<8x8xf32>
      %88 = tpu.matmul %5, %87, %cst_54 {dimension_numbers = #tpu.dot_dimension_numbers<[1], [0], [0], [1], [0, 0, 1, 1], [], []>} : vector<8x32xbf16>, vector<32x8xbf16>, vector<8x8xf32> -> vector<8x8xf32>
      %89 = arith.truncf %88 : vector<8x8xf32> to vector<8x8xbf16>
      %90 = arith.index_cast %arg20 : i32 to index
      %c0_55 = arith.constant 0 : index
      %c0_56 = arith.constant 0 : index
      %91 = vector.load %arg17[%90, %c0_55, %c0_56] : memref<4x8x8xbf16, #tpu.memory_space<vmem>>, vector<1x8x8xbf16>
      %92 = vector.shape_cast %91 : vector<1x8x8xbf16> to vector<8x8xbf16>
      %cst_57 = arith.constant dense<0.000000e+00> : vector<8x8xf32>
      %93 = tpu.matmul %89, %92, %cst_57 {dimension_numbers = #tpu.dot_dimension_numbers<[1], [1], [0], [0], [0, 0, 1, 0], [], []>} : vector<8x8xbf16>, vector<8x8xbf16>, vector<8x8xf32> -> vector<8x8xf32>
      %cst_58 = arith.constant dense<0xFF800000> : vector<8xf32>
      %94 = vector.multi_reduction <maximumf>, %93, %cst_58 [1] : vector<8x8xf32> to vector<8xf32>
      %95 = vector.shape_cast %94 : vector<8xf32> to vector<8x1xf32>
      %96 = vector.broadcast %95 : vector<8x1xf32> to vector<8x8xf32>
      %97 = arith.subf %93, %96 : vector<8x8xf32>
      %98 = math.exp %97 : vector<8x8xf32>
      %cst_59 = arith.constant dense<0.000000e+00> : vector<8xf32>
      %99 = vector.multi_reduction <add>, %98, %cst_59 [1] : vector<8x8xf32> to vector<8xf32>
      %100 = vector.shape_cast %99 : vector<8xf32> to vector<8x1xf32>
      %101 = tpu.reciprocal %100 {approx = true} : vector<8x1xf32> -> vector<8x1xf32>
      %102 = vector.broadcast %101 : vector<8x1xf32> to vector<8x8xf32>
      %103 = arith.mulf %98, %102 : vector<8x8xf32>
      %104 = arith.truncf %103 : vector<8x8xf32> to vector<8x8xbf16>
      %105 = arith.index_cast %arg20 : i32 to index
      %c0_60 = arith.constant 0 : index
      %c0_61 = arith.constant 0 : index
      %106 = vector.load %arg18[%105, %c0_60, %c0_61] : memref<4x8x8xbf16, #tpu.memory_space<vmem>>, vector<1x8x8xbf16>
      %107 = vector.shape_cast %106 : vector<1x8x8xbf16> to vector<8x8xbf16>
      %cst_62 = arith.constant dense<0.000000e+00> : vector<8x8xf32>
      %108 = tpu.matmul %104, %107, %cst_62 {dimension_numbers = #tpu.dot_dimension_numbers<[1], [0], [0], [1], [0, 0, 1, 1], [], []>} : vector<8x8xbf16>, vector<8x8xbf16>, vector<8x8xf32> -> vector<8x8xf32>
      %109 = arith.truncf %108 : vector<8x8xf32> to vector<8x8xbf16>
      %c0_63 = arith.constant 0 : index
      %c0_64 = arith.constant 0 : index
      %110 = vector.load %arg19[%c0_63, %c0_64] : memref<8x32xf32, #tpu.memory_space<vmem>>, vector<8x32xf32>
      %111 = arith.index_cast %arg20 : i32 to index
      %c0_65 = arith.constant 0 : index
      %c0_66 = arith.constant 0 : index
      %112 = vector.load %arg7[%111, %c0_65, %c0_66] : memref<4x8x32xbf16, #tpu.memory_space<vmem>>, vector<1x8x32xbf16>
      %113 = vector.shape_cast %112 : vector<1x8x32xbf16> to vector<8x32xbf16>
      %cst_67 = arith.constant dense<0.000000e+00> : vector<8x32xf32>
      %114 = tpu.matmul %109, %113, %cst_67 {dimension_numbers = #tpu.dot_dimension_numbers<[1], [0], [0], [1], [0, 0, 1, 1], [], []>} : vector<8x8xbf16>, vector<8x32xbf16>, vector<8x32xf32> -> vector<8x32xf32>
      %115 = arith.addf %110, %114 : vector<8x32xf32>
      %c0_68 = arith.constant 0 : index
      %c0_69 = arith.constant 0 : index
      %116 = vector.load %arg19[%c0_68, %c0_69] : memref<8x32xf32, #tpu.memory_space<vmem>>, vector<8x32xf32>
      tpu.vector_store %arg19[%c0_68, %c0_69], %115 {strides = array<i32>} : memref<8x32xf32, #tpu.memory_space<vmem>>, vector<8x32xf32>,
    }
    %c4_i32_6 = arith.constant 4 : i32
    %c0_7 = arith.constant 0 : index
    %c0_8 = arith.constant 0 : index
    %9 = vector.load %arg19[%c0_7, %c0_8] : memref<8x32xf32, #tpu.memory_space<vmem>>, vector<8x32xf32>
    %10 = arith.addf %4, %9 : vector<8x32xf32>
    %c0_9 = arith.constant 0 : index
    %c0_10 = arith.constant 0 : index
    %11 = vector.load %arg12[%c0_9, %c0_10] : memref<1x32xf32, #tpu.memory_space<vmem>>, vector<1x32xf32>
    %c0_11 = arith.constant 0 : index
    %c0_12 = arith.constant 0 : index
    %12 = vector.load %arg13[%c0_11, %c0_12] : memref<1x32xf32, #tpu.memory_space<vmem>>, vector<1x32xf32>
    %cst_13 = arith.constant dense<0.000000e+00> : vector<8xf32>
    %13 = vector.multi_reduction <add>, %10, %cst_13 [1] : vector<8x32xf32> to vector<8xf32>
    %14 = vector.shape_cast %13 : vector<8xf32> to vector<8x1xf32>
    %cst_14 = arith.constant 3.200000e+01 : f32
    %15 = vector.broadcast %cst_14 : f32 to vector<8x1xf32>
    %16 = arith.divf %14, %15 : vector<8x1xf32>
    %17 = vector.broadcast %16 : vector<8x1xf32> to vector<8x32xf32>
    %18 = arith.subf %10, %17 : vector<8x32xf32>
    %19 = arith.mulf %18, %18 : vector<8x32xf32>
    %cst_15 = arith.constant dense<0.000000e+00> : vector<8xf32>
    %20 = vector.multi_reduction <add>, %19, %cst_15 [1] : vector<8x32xf32> to vector<8xf32>
    %21 = vector.shape_cast %20 : vector<8xf32> to vector<8x1xf32>
    %cst_16 = arith.constant 3.200000e+01 : f32
    %22 = vector.broadcast %cst_16 : f32 to vector<8x1xf32>
    %23 = arith.divf %21, %22 : vector<8x1xf32>
    %cst_17 = arith.constant 9.99999974E-6 : f32
    %24 = vector.broadcast %cst_17 : f32 to vector<8x1xf32>
    %25 = arith.addf %23, %24 : vector<8x1xf32>
    %26 = math.rsqrt %25 : vector<8x1xf32>
    %27 = vector.broadcast %26 : vector<8x1xf32> to vector<8x32xf32>
    %28 = arith.mulf %18, %27 : vector<8x32xf32>
    %29 = vector.broadcast %11 : vector<1x32xf32> to vector<8x32xf32>
    %30 = arith.mulf %28, %29 : vector<8x32xf32>
    %31 = vector.broadcast %12 : vector<1x32xf32> to vector<8x32xf32>
    %32 = arith.addf %30, %31 : vector<8x32xf32>
    %33 = arith.truncf %32 : vector<8x32xf32> to vector<8x32xbf16>
    %cst_18 = arith.constant 0.000000e+00 : f32
    %34 = vector.broadcast %cst_18 : f32 to vector<8x32xf32>
    %c0_19 = arith.constant 0 : index
    %c0_20 = arith.constant 0 : index
    %35 = vector.load %arg19[%c0_19, %c0_20] : memref<8x32xf32, #tpu.memory_space<vmem>>, vector<8x32xf32>
    tpu.vector_store %arg19[%c0_19, %c0_20], %34 {strides = array<i32>} : memref<8x32xf32, #tpu.memory_space<vmem>>, vector<8x32xf32>,
    %c0_i32_21 = arith.constant 0 : i32
    %36 = arith.index_cast %c0_i32_21 : i32 to index
    %c0_22 = arith.constant 0 : index
    %c0_23 = arith.constant 0 : index
    %37 = vector.load %arg8[%36, %c0_22, %c0_23] : memref<1x32x64xbf16, #tpu.memory_space<vmem>>, vector<1x32x64xbf16>
    %38 = vector.shape_cast %37 : vector<1x32x64xbf16> to vector<32x64xbf16>
    %cst_24 = arith.constant dense<0.000000e+00> : vector<8x64xf32>
    %39 = tpu.matmul %33, %38, %cst_24 {dimension_numbers = #tpu.dot_dimension_numbers<[1], [0], [0], [1], [0, 0, 1, 1], [], []>} : vector<8x32xbf16>, vector<32x64xbf16>, vector<8x64xf32> -> vector<8x64xf32>
    %40 = arith.index_cast %c0_i32_21 : i32 to index
    %c0_25 = arith.constant 0 : index
    %c0_26 = arith.constant 0 : index
    %41 = vector.load %arg9[%40, %c0_25, %c0_26] : memref<1x1x64xf32, #tpu.memory_space<vmem>>, vector<1x1x64xf32>
    %42 = vector.shape_cast %41 : vector<1x1x64xf32> to vector<1x64xf32>
    %43 = vector.broadcast %42 : vector<1x64xf32> to vector<8x64xf32>
    %44 = arith.addf %39, %43 : vector<8x64xf32>
    %cst_27 = arith.constant 0.000000e+00 : f32
    %45 = vector.broadcast %cst_27 : f32 to vector<8x64xf32>
    %46 = arith.maximumf %44, %45 : vector<8x64xf32>
    %47 = arith.truncf %46 : vector<8x64xf32> to vector<8x64xbf16>
    %c0_28 = arith.constant 0 : index
    %c0_29 = arith.constant 0 : index
    %48 = vector.load %arg19[%c0_28, %c0_29] : memref<8x32xf32, #tpu.memory_space<vmem>>, vector<8x32xf32>
    %49 = arith.index_cast %c0_i32_21 : i32 to index
    %c0_30 = arith.constant 0 : index
    %c0_31 = arith.constant 0 : index
    %50 = vector.load %arg10[%49, %c0_30, %c0_31] : memref<1x64x32xbf16, #tpu.memory_space<vmem>>, vector<1x64x32xbf16>
    %51 = vector.shape_cast %50 : vector<1x64x32xbf16> to vector<64x32xbf16>
    %cst_32 = arith.constant dense<0.000000e+00> : vector<8x32xf32>
    %52 = tpu.matmul %47, %51, %cst_32 {dimension_numbers = #tpu.dot_dimension_numbers<[1], [0], [0], [1], [0, 0, 1, 1], [], []>} : vector<8x64xbf16>, vector<64x32xbf16>, vector<8x32xf32> -> vector<8x32xf32>
    %53 = arith.addf %48, %52 : vector<8x32xf32>
    %c0_33 = arith.constant 0 : index
    %c0_34 = arith.constant 0 : index
    %54 = vector.load %arg19[%c0_33, %c0_34] : memref<8x32xf32, #tpu.memory_space<vmem>>, vector<8x32xf32>
    tpu.vector_store %arg19[%c0_33, %c0_34], %53 {strides = array<i32>} : memref<8x32xf32, #tpu.memory_space<vmem>>, vector<8x32xf32>,
    %c1_i32_35 = arith.constant 1 : i32
    %c0_36 = arith.constant 0 : index
    %c0_37 = arith.constant 0 : index
    %55 = vector.load %arg19[%c0_36, %c0_37] : memref<8x32xf32, #tpu.memory_space<vmem>>, vector<8x32xf32>
    %c0_38 = arith.constant 0 : index
    %c0_39 = arith.constant 0 : index
    %56 = vector.load %arg11[%c0_38, %c0_39] : memref<1x32xf32, #tpu.memory_space<vmem>>, vector<1x32xf32>
    %57 = vector.broadcast %56 : vector<1x32xf32> to vector<8x32xf32>
    %58 = arith.addf %55, %57 : vector<8x32xf32>
    %59 = arith.addf %32, %58 : vector<8x32xf32>
    %c0_40 = arith.constant 0 : index
    %c0_41 = arith.constant 0 : index
    %60 = vector.load %arg14[%c0_40, %c0_41] : memref<1x32xf32, #tpu.memory_space<vmem>>, vector<1x32xf32>
    %c0_42 = arith.constant 0 : index
    %c0_43 = arith.constant 0 : index
    %61 = vector.load %arg15[%c0_42, %c0_43] : memref<1x32xf32, #tpu.memory_space<vmem>>, vector<1x32xf32>
    %cst_44 = arith.constant dense<0.000000e+00> : vector<8xf32>
    %62 = vector.multi_reduction <add>, %59, %cst_44 [1] : vector<8x32xf32> to vector<8xf32>
    %63 = vector.shape_cast %62 : vector<8xf32> to vector<8x1xf32>
    %cst_45 = arith.constant 3.200000e+01 : f32
    %64 = vector.broadcast %cst_45 : f32 to vector<8x1xf32>
    %65 = arith.divf %63, %64 : vector<8x1xf32>
    %66 = vector.broadcast %65 : vector<8x1xf32> to vector<8x32xf32>
    %67 = arith.subf %59, %66 : vector<8x32xf32>
    %68 = arith.mulf %67, %67 : vector<8x32xf32>
    %cst_46 = arith.constant dense<0.000000e+00> : vector<8xf32>
    %69 = vector.multi_reduction <add>, %68, %cst_46 [1] : vector<8x32xf32> to vector<8xf32>
    %70 = vector.shape_cast %69 : vector<8xf32> to vector<8x1xf32>
    %cst_47 = arith.constant 3.200000e+01 : f32
    %71 = vector.broadcast %cst_47 : f32 to vector<8x1xf32>
    %72 = arith.divf %70, %71 : vector<8x1xf32>
    %cst_48 = arith.constant 9.99999974E-6 : f32
    %73 = vector.broadcast %cst_48 : f32 to vector<8x1xf32>
    %74 = arith.addf %72, %73 : vector<8x1xf32>
    %75 = math.rsqrt %74 : vector<8x1xf32>
    %76 = vector.broadcast %75 : vector<8x1xf32> to vector<8x32xf32>
    %77 = arith.mulf %67, %76 : vector<8x32xf32>
    %78 = vector.broadcast %60 : vector<1x32xf32> to vector<8x32xf32>
    %79 = arith.mulf %77, %78 : vector<8x32xf32>
    %80 = vector.broadcast %61 : vector<1x32xf32> to vector<8x32xf32>
    %81 = arith.addf %79, %80 : vector<8x32xf32>
    %c0_49 = arith.constant 0 : index
    %c0_50 = arith.constant 0 : index
    %c0_51 = arith.constant 0 : index
    %82 = vector.load %arg16[%c0_49, %c0_50, %c0_51] : memref<1x8x32xf32, #tpu.memory_space<vmem>>, vector<1x8x32xf32>
    %83 = vector.shape_cast %82 : vector<1x8x32xf32> to vector<8x32xf32>
    %84 = vector.shape_cast %81 : vector<8x32xf32> to vector<1x8x32xf32>
    tpu.vector_store %arg16[%c0_49, %c0_50, %c0_51], %84 {strides = array<i32>} : memref<1x8x32xf32, #tpu.memory_space<vmem>>, vector<1x8x32xf32>,
    return
  }
  func.func @transform_0(%arg0: i32, %arg1: i32) -> (i32, i32, i32) {
    %c0_i32 = arith.constant 0 : i32
    %c0_i32_0 = arith.constant 0 : i32
    %c0_i32_1 = arith.constant 0 : i32
    return %arg0, %c0_i32, %c0_i32_0 : i32, i32, i32
  }
  func.func @transform_1(%arg0: i32, %arg1: i32) -> (i32, i32, i32) {
    %c0_i32 = arith.constant 0 : i32
    %c0_i32_0 = arith.constant 0 : i32
    return %arg0, %arg1, %c0_i32 : i32, i32, i32
  }
  func.func @transform_2(%arg0: i32, %arg1: i32) -> (i32, i32, i32) {
    %c0_i32 = arith.constant 0 : i32
    %c0_i32_0 = arith.constant 0 : i32
    %c0_i32_1 = arith.constant 0 : i32
    %c0_i32_2 = arith.constant 0 : i32
    return %c0_i32, %c0_i32_0, %c0_i32_1 : i32, i32, i32
  }
  func.func @transform_3(%arg0: i32, %arg1: i32) -> (i32, i32, i32) {
    %c0_i32 = arith.constant 0 : i32
    %c0_i32_0 = arith.constant 0 : i32
    %c0_i32_1 = arith.constant 0 : i32
    %c0_i32_2 = arith.constant 0 : i32
    return %c0_i32, %c0_i32_0, %c0_i32_1 : i32, i32, i32
  }
  func.func @transform_4(%arg0: i32, %arg1: i32) -> (i32, i32, i32) {
    %c0_i32 = arith.constant 0 : i32
    %c0_i32_0 = arith.constant 0 : i32
    %c0_i32_1 = arith.constant 0 : i32
    %c0_i32_2 = arith.constant 0 : i32
    return %c0_i32, %c0_i32_0, %c0_i32_1 : i32, i32, i32
  }
  func.func @transform_5(%arg0: i32, %arg1: i32) -> (i32, i32, i32) {
    %c0_i32 = arith.constant 0 : i32
    %c0_i32_0 = arith.constant 0 : i32
    %c0_i32_1 = arith.constant 0 : i32
    %c0_i32_2 = arith.constant 0 : i32
    return %c0_i32, %c0_i32_0, %c0_i32_1 : i32, i32, i32
  }
  func.func @transform_6(%arg0: i32, %arg1: i32) -> (i32, i32, i32) {
    %c0_i32 = arith.constant 0 : i32
    %c0_i32_0 = arith.constant 0 : i32
    %c0_i32_1 = arith.constant 0 : i32
    %c0_i32_2 = arith.constant 0 : i32
    return %c0_i32, %c0_i32_0, %c0_i32_1 : i32, i32, i32
  }
  func.func @transform_7(%arg0: i32, %arg1: i32) -> (i32, i32, i32) {
    %c0_i32 = arith.constant 0 : i32
    %c0_i32_0 = arith.constant 0 : i32
    %c0_i32_1 = arith.constant 0 : i32
    %c0_i32_2 = arith.constant 0 : i32
    return %c0_i32, %c0_i32_0, %c0_i32_1 : i32, i32, i32
  }
  func.func @transform_8(%arg0: i32, %arg1: i32) -> (i32, i32, i32) {
    %c0_i32 = arith.constant 0 : i32
    %c0_i32_0 = arith.constant 0 : i32
    %c0_i32_1 = arith.constant 0 : i32
    %c0_i32_2 = arith.constant 0 : i32
    return %c0_i32, %c0_i32_0, %c0_i32_1 : i32, i32, i32
  }
  func.func @transform_9(%arg0: i32, %arg1: i32) -> (i32, i32) {
    %c0_i32 = arith.constant 0 : i32
    %c0_i32_0 = arith.constant 0 : i32
    %c0_i32_1 = arith.constant 0 : i32
    return %c0_i32, %c0_i32_0 : i32, i32
  }
  func.func @transform_10(%arg0: i32, %arg1: i32) -> (i32, i32) {
    %c0_i32 = arith.constant 0 : i32
    %c0_i32_0 = arith.constant 0 : i32
    %c0_i32_1 = arith.constant 0 : i32
    return %c0_i32, %c0_i32_0 : i32, i32
  }
  func.func @transform_11(%arg0: i32, %arg1: i32) -> (i32, i32) {
    %c0_i32 = arith.constant 0 : i32
    %c0_i32_0 = arith.constant 0 : i32
    %c0_i32_1 = arith.constant 0 : i32
    return %c0_i32, %c0_i32_0 : i32, i32
  }
  func.func @transform_12(%arg0: i32, %arg1: i32) -> (i32, i32) {
    %c0_i32 = arith.constant 0 : i32
    %c0_i32_0 = arith.constant 0 : i32
    %c0_i32_1 = arith.constant 0 : i32
    return %c0_i32, %c0_i32_0 : i32, i32
  }
  func.func @transform_13(%arg0: i32, %arg1: i32) -> (i32, i32) {
    %c0_i32 = arith.constant 0 : i32
    %c0_i32_0 = arith.constant 0 : i32
    %c0_i32_1 = arith.constant 0 : i32
    return %c0_i32, %c0_i32_0 : i32, i32
  }
  func.func @transform_14(%arg0: i32, %arg1: i32) -> (i32, i32, i32) {
    %c0_i32 = arith.constant 0 : i32
    %c0_i32_0 = arith.constant 0 : i32
    return %arg0, %arg1, %c0_i32 : i32, i32, i32
  }
}

</mosaic_0001>

<llo_original>
// kernel: tpu_custom_call.1
$region0: #{tpu_custom_call.1}
  #allocation0 [shape = 'u32[]', space=smem, size = 0x4, offset = 0x4, fixed_abs, tag = 'smem constant byte address 0x4 - core index']
  #allocation1 [shape = 'u32[144,128]{1,0:T(1,128)}', space=vmem, size = 0x12000, scoped, tag = 'internal scratch']
  #allocation2 [shape = 'bf16[4,8,8]{2,1,0:T(8,128)(2,1)}', space=vmem, size = 0x2000, scoped, tag = 'scratch operand']
  #allocation3 [shape = 'bf16[4,8,8]{2,1,0:T(8,128)(2,1)}', space=vmem, size = 0x2000, scoped, tag = 'scratch operand']
  #allocation4 [shape = 'f32[8,32]{1,0:T(8,128)}', space=vmem, size = 0x1000, scoped, tag = 'scratch operand']
  %s0 = inlined_call_operand.vmem [shape: bf16[2,8,32], index: 0, kind: input, shape index: {}]
  %s1 = inlined_call_operand.vmem [shape: f32[2,8,32], index: 1, kind: input, shape index: {}]
  %s2 = inlined_call_operand.vmem [shape: bf16[4,32,8], index: 2, kind: input, shape index: {}]
  %s3 = inlined_call_operand.vmem [shape: bf16[4,32,8], index: 3, kind: input, shape index: {}]
  %s4 = inlined_call_operand.vmem [shape: bf16[4,32,8], index: 4, kind: input, shape index: {}]
  %s5 = inlined_call_operand.vmem [shape: bf16[4,8,32], index: 5, kind: input, shape index: {}]
  %s6 = inlined_call_operand.vmem [shape: bf16[1,32,64], index: 6, kind: input, shape index: {}]
  %s7 = inlined_call_operand.vmem [shape: f32[1,1,64], index: 7, kind: input, shape index: {}]
  %s8 = inlined_call_operand.vmem [shape: bf16[1,64,32], index: 8, kind: input, shape index: {}]
  %s9 = inlined_call_operand.vmem [shape: f32[1,32], index: 9, kind: input, shape index: {}]
  %s10 = inlined_call_operand.vmem [shape: f32[1,32], index: 10, kind: input, shape index: {}]
  %s11 = inlined_call_operand.vmem [shape: f32[1,32], index: 11, kind: input, shape index: {}]
  %s12 = inlined_call_operand.vmem [shape: f32[1,32], index: 12, kind: input, shape index: {}]
  %s13 = inlined_call_operand.vmem [shape: f32[1,32], index: 13, kind: input, shape index: {}]
  %s14 = inlined_call_operand.hbm [shape: f32[2,8,32], index: 14, kind: output, shape index: {}]
  %s15 = sld [smem:[#allocation0]]
  $region107: #{tpu_custom_call.1} parent=0
    _
  %s17 = ssub.s32 1, %s15
  %s18 = scalar_select 0, %s17, %s15
  $region1: #{tpu_custom_call.1} parent=0
    #allocation5 [shape = 'u8[8192]{0}', space=vmem, size = 0x2000, scoped, tag = 'output window, operand 0']
    #allocation6 [shape = 's32[2]{0}', space=sflag, size = 0x8, scoped, tag = 'scoped memory for tpu_custom_call.1']
    %19 = vsyncpa [#allocation6], 0
    %s20 = scalar_lea.sflag [#allocation6], 1
    %21 = vsyncpa %s20, 0
    loop: start=0, step=1, limit=4
    $region2: #{tpu_custom_call.1} parent=1 // loop_pre_header
      _
    $region3: #{tpu_custom_call.1} parent=1 // loop_header
      %s23 = sphi 0, %s27
      %p24 = scmp.ge.s32.totalorder %s23, 4
      %s30 = sphi 0, %s42
      %s31 = sphi 0, %s38
      %s32 = sphi 0, %s30
      %s33 = sphi 0, %s31
      %s34 = sphi 0, %s32
      %s35 = sphi 0, %s33
      %s45 = sphi 0, %s47
      %s48 = sphi 0, %s45
      %s49 = sphi 0, %s48
      %s65 = sphi 0, %s49
      %s73 = sphi 0, %s75
      %s76 = sphi 0, %s73
      %s77 = sphi 0, %s76
      %s93 = sphi 0, %s77
      %s97 = sphi 0, %s97
      %s99 = sphi 0, %s97
      %s100 = sphi 0, %s99
      %s114 = sphi 0, %s100
      %s118 = sphi 0, %s118
      %s120 = sphi 0, %s118
      %s121 = sphi 0, %s120
      %s135 = sphi 0, %s121
      %s139 = sphi 0, %s139
      %s141 = sphi 0, %s139
      %s142 = sphi 0, %s141
      %s156 = sphi 0, %s142
      %s160 = sphi 0, %s160
      %s162 = sphi 0, %s160
      %s163 = sphi 0, %s162
      %s177 = sphi 0, %s163
      %s181 = sphi 0, %s181
      %s183 = sphi 0, %s181
      %s184 = sphi 0, %s183
      %s198 = sphi 0, %s184
      %s202 = sphi 0, %s202
      %s204 = sphi 0, %s202
      %s205 = sphi 0, %s204
      %s219 = sphi 0, %s205
      %s223 = sphi 0, %s223
      %s225 = sphi 0, %s223
      %s226 = sphi 0, %s225
      %s240 = sphi 0, %s226
      %s244 = sphi 0, %s244
      %s246 = sphi 0, %s244
      %s247 = sphi 0, %s246
      %s261 = sphi 0, %s247
      %s265 = sphi 0, %s265
      %s267 = sphi 0, %s265
      %s268 = sphi 0, %s267
      %s282 = sphi 0, %s268
      %s286 = sphi 0, %s286
      %s288 = sphi 0, %s286
      %s289 = sphi 0, %s288
      %s303 = sphi 0, %s289
      %s307 = sphi 0, %s307
      %s309 = sphi 0, %s307
      %s310 = sphi 0, %s309
      %s324 = sphi 0, %s310
      %s328 = sphi 0, %s328
      %s330 = sphi 0, %s328
      %s331 = sphi 0, %s330
      %s345 = sphi 0, %s331
      %s353 = sphi 0, %s355
      %s356 = sphi 0, %s353
      %s357 = sphi 0, %s356
      %s373 = sphi 0, %s357
    $region4: #{tpu_custom_call.1} parent=1 // loop_header_branch
      %26 = sbr.rel (%p24) target = $region8
    $region5: #{tpu_custom_call.1} parent=1 // loop_body
      %s28 = ssub.s32 %s23, 1
      %s29 = ssub.s32 %s23, 2
      %s36 = sadd.s32 1, %s31
      %p37 = scmp.ge.s32.totalorder %s36, 1
      %s38 = scalar_select %p37, 0, %s36
      %s39 = sadd.s32 1, %s30
      %s40 = scalar_select %p37, %s39, %s30
      %p41 = scmp.ge.s32.totalorder %s40, 2
      %s42 = scalar_select %p41, 0, %s40
      %s43 = ssub.s32 %s30, %s42
      %p44 = scmp.eq.s32.totalorder %s43, 0
      %s46 = sadd.s32 %s45, 1
      %s47 = scalar_select %p44, %s45, %s46
      %p50 = pneg %p44
      %p51 = scmp.eq.s32.totalorder %s23, 1
      %p52 = por %p50, %p51
      %p53 = scmp.ne.s32.totalorder %s45, %s48
      %p54 = scmp.eq.s32.totalorder %s23, 0
      %p55 = por %p53, %p54
      %p56 = scmp.ne.s32.totalorder %s45, %s48
      %p57 = scmp.eq.s32.totalorder %s28, 1
      %p58 = por %p56, %p57
      %p59 = scmp.ne.s32.totalorder %s48, %s49
      %p60 = scmp.eq.s32.totalorder %s28, 0
      %p61 = por %p59, %p60
      %p62 = scmp.ne.s32.totalorder %s48, %s49
      %p63 = scmp.eq.s32.totalorder %s29, 1
      %p64 = por %p62, %p63
      %p66 = scmp.ne.s32.totalorder %s49, %s65
      %p67 = scmp.eq.s32.totalorder %s29, 0
      %p68 = por %p66, %p67
      %s69 = ssub.s32 %s30, %s42
      %s70 = ssub.s32 %s31, %s38
      %s71 = sor.u32 %s69, %s70
      %p72 = scmp.eq.s32.totalorder %s71, 0
      %s74 = sadd.s32 %s73, 1
      %s75 = scalar_select %p72, %s73, %s74
      %p78 = pneg %p72
      %p79 = scmp.eq.s32.totalorder %s23, 1
      %p80 = por %p78, %p79
      %p81 = scmp.ne.s32.totalorder %s73, %s76
      %p82 = scmp.eq.s32.totalorder %s23, 0
      %p83 = por %p81, %p82
      %p84 = scmp.ne.s32.totalorder %s73, %s76
      %p85 = scmp.eq.s32.totalorder %s28, 1
      %p86 = por %p84, %p85
      %p87 = scmp.ne.s32.totalorder %s76, %s77
      %p88 = scmp.eq.s32.totalorder %s28, 0
      %p89 = por %p87, %p88
      %p90 = scmp.ne.s32.totalorder %s76, %s77
      %p91 = scmp.eq.s32.totalorder %s29, 1
      %p92 = por %p90, %p91
      %p94 = scmp.ne.s32.totalorder %s77, %s93
      %p95 = scmp.eq.s32.totalorder %s29, 0
      %p96 = por %p94, %p95
      %s98 = sadd.s32 %s97, 1
      %p101 = scmp.eq.s32.totalorder %s23, 1
      %p102 = scmp.ne.s32.totalorder %s97, %s99
      %p103 = scmp.eq.s32.totalorder %s23, 0
      %p104 = por %p102, %p103
      %p105 = scmp.ne.s32.totalorder %s97, %s99
      %p106 = scmp.eq.s32.totalorder %s28, 1
      %p107 = por %p105, %p106
      %p108 = scmp.ne.s32.totalorder %s99, %s100
      %p109 = scmp.eq.s32.totalorder %s28, 0
      %p110 = por %p108, %p109
      %p111 = scmp.ne.s32.totalorder %s99, %s100
      %p112 = scmp.eq.s32.totalorder %s29, 1
      %p113 = por %p111, %p112
      %p115 = scmp.ne.s32.totalorder %s100, %s114
      %p116 = scmp.eq.s32.totalorder %s29, 0
      %p117 = por %p115, %p116
      %s119 = sadd.s32 %s118, 1
      %p122 = scmp.eq.s32.totalorder %s23, 1
      %p123 = scmp.ne.s32.totalorder %s118, %s120
      %p124 = scmp.eq.s32.totalorder %s23, 0
      %p125 = por %p123, %p124
      %p126 = scmp.ne.s32.totalorder %s118, %s120
      %p127 = scmp.eq.s32.totalorder %s28, 1
      %p128 = por %p126, %p127
      %p129 = scmp.ne.s32.totalorder %s120, %s121
      %p130 = scmp.eq.s32.totalorder %s28, 0
      %p131 = por %p129, %p130
      %p132 = scmp.ne.s32.totalorder %s120, %s121
      %p133 = scmp.eq.s32.totalorder %s29, 1
      %p134 = por %p132, %p133
      %p136 = scmp.ne.s32.totalorder %s121, %s135
      %p137 = scmp.eq.s32.totalorder %s29, 0
      %p138 = por %p136, %p137
      %s140 = sadd.s32 %s139, 1
      %p143 = scmp.eq.s32.totalorder %s23, 1
      %p144 = scmp.ne.s32.totalorder %s139, %s141
      %p145 = scmp.eq.s32.totalorder %s23, 0
      %p146 = por %p144, %p145
      %p147 = scmp.ne.s32.totalorder %s139, %s141
      %p148 = scmp.eq.s32.totalorder %s28, 1
      %p149 = por %p147, %p148
      %p150 = scmp.ne.s32.totalorder %s141, %s142
      %p151 = scmp.eq.s32.totalorder %s28, 0
      %p152 = por %p150, %p151
      %p153 = scmp.ne.s32.totalorder %s141, %s142
      %p154 = scmp.eq.s32.totalorder %s29, 1
      %p155 = por %p153, %p154
      %p157 = scmp.ne.s32.totalorder %s142, %s156
      %p158 = scmp.eq.s32.totalorder %s29, 0
      %p159 = por %p157, %p158
      %s161 = sadd.s32 %s160, 1
      %p164 = scmp.eq.s32.totalorder %s23, 1
      %p165 = scmp.ne.s32.totalorder %s160, %s162
      %p166 = scmp.eq.s32.totalorder %s23, 0
      %p167 = por %p165, %p166
      %p168 = scmp.ne.s32.totalorder %s160, %s162
      %p169 = scmp.eq.s32.totalorder %s28, 1
      %p170 = por %p168, %p169
      %p171 = scmp.ne.s32.totalorder %s162, %s163
      %p172 = scmp.eq.s32.totalorder %s28, 0
      %p173 = por %p171, %p172
      %p174 = scmp.ne.s32.totalorder %s162, %s163
      %p175 = scmp.eq.s32.totalorder %s29, 1
      %p176 = por %p174, %p175
      %p178 = scmp.ne.s32.totalorder %s163, %s177
      %p179 = scmp.eq.s32.totalorder %s29, 0
      %p180 = por %p178, %p179
      %s182 = sadd.s32 %s181, 1
      %p185 = scmp.eq.s32.totalorder %s23, 1
      %p186 = scmp.ne.s32.totalorder %s181, %s183
      %p187 = scmp.eq.s32.totalorder %s23, 0
      %p188 = por %p186, %p187
      %p189 = scmp.ne.s32.totalorder %s181, %s183
      %p190 = scmp.eq.s32.totalorder %s28, 1
      %p191 = por %p189, %p190
      %p192 = scmp.ne.s32.totalorder %s183, %s184
      %p193 = scmp.eq.s32.totalorder %s28, 0
      %p194 = por %p192, %p193
      %p195 = scmp.ne.s32.totalorder %s183, %s184
      %p196 = scmp.eq.s32.totalorder %s29, 1
      %p197 = por %p195, %p196
      %p199 = scmp.ne.s32.totalorder %s184, %s198
      %p200 = scmp.eq.s32.totalorder %s29, 0
      %p201 = por %p199, %p200
      %s203 = sadd.s32 %s202, 1
      %p206 = scmp.eq.s32.totalorder %s23, 1
      %p207 = scmp.ne.s32.totalorder %s202, %s204
      %p208 = scmp.eq.s32.totalorder %s23, 0
      %p209 = por %p207, %p208
      %p210 = scmp.ne.s32.totalorder %s202, %s204
      %p211 = scmp.eq.s32.totalorder %s28, 1
      %p212 = por %p210, %p211
      %p213 = scmp.ne.s32.totalorder %s204, %s205
      %p214 = scmp.eq.s32.totalorder %s28, 0
      %p215 = por %p213, %p214
      %p216 = scmp.ne.s32.totalorder %s204, %s205
      %p217 = scmp.eq.s32.totalorder %s29, 1
      %p218 = por %p216, %p217
      %p220 = scmp.ne.s32.totalorder %s205, %s219
      %p221 = scmp.eq.s32.totalorder %s29, 0
      %p222 = por %p220, %p221
      %s224 = sadd.s32 %s223, 1
      %p227 = scmp.eq.s32.totalorder %s23, 1
      %p228 = scmp.ne.s32.totalorder %s223, %s225
      %p229 = scmp.eq.s32.totalorder %s23, 0
      %p230 = por %p228, %p229
      %p231 = scmp.ne.s32.totalorder %s223, %s225
      %p232 = scmp.eq.s32.totalorder %s28, 1
      %p233 = por %p231, %p232
      %p234 = scmp.ne.s32.totalorder %s225, %s226
      %p235 = scmp.eq.s32.totalorder %s28, 0
      %p236 = por %p234, %p235
      %p237 = scmp.ne.s32.totalorder %s225, %s226
      %p238 = scmp.eq.s32.totalorder %s29, 1
      %p239 = por %p237, %p238
      %p241 = scmp.ne.s32.totalorder %s226, %s240
      %p242 = scmp.eq.s32.totalorder %s29, 0
      %p243 = por %p241, %p242
      %s245 = sadd.s32 %s244, 1
      %p248 = scmp.eq.s32.totalorder %s23, 1
      %p249 = scmp.ne.s32.totalorder %s244, %s246
      %p250 = scmp.eq.s32.totalorder %s23, 0
      %p251 = por %p249, %p250
      %p252 = scmp.ne.s32.totalorder %s244, %s246
      %p253 = scmp.eq.s32.totalorder %s28, 1
      %p254 = por %p252, %p253
      %p255 = scmp.ne.s32.totalorder %s246, %s247
      %p256 = scmp.eq.s32.totalorder %s28, 0
      %p257 = por %p255, %p256
      %p258 = scmp.ne.s32.totalorder %s246, %s247
      %p259 = scmp.eq.s32.totalorder %s29, 1
      %p260 = por %p258, %p259
      %p262 = scmp.ne.s32.totalorder %s247, %s261
      %p263 = scmp.eq.s32.totalorder %s29, 0
      %p264 = por %p262, %p263
      %s266 = sadd.s32 %s265, 1
      %p269 = scmp.eq.s32.totalorder %s23, 1
      %p270 = scmp.ne.s32.totalorder %s265, %s267
      %p271 = scmp.eq.s32.totalorder %s23, 0
      %p272 = por %p270, %p271
      %p273 = scmp.ne.s32.totalorder %s265, %s267
      %p274 = scmp.eq.s32.totalorder %s28, 1
      %p275 = por %p273, %p274
      %p276 = scmp.ne.s32.totalorder %s267, %s268
      %p277 = scmp.eq.s32.totalorder %s28, 0
      %p278 = por %p276, %p277
      %p279 = scmp.ne.s32.totalorder %s267, %s268
      %p280 = scmp.eq.s32.totalorder %s29, 1
      %p281 = por %p279, %p280
      %p283 = scmp.ne.s32.totalorder %s268, %s282
      %p284 = scmp.eq.s32.totalorder %s29, 0
      %p285 = por %p283, %p284
      %s287 = sadd.s32 %s286, 1
      %p290 = scmp.eq.s32.totalorder %s23, 1
      %p291 = scmp.ne.s32.totalorder %s286, %s288
      %p292 = scmp.eq.s32.totalorder %s23, 0
      %p293 = por %p291, %p292
      %p294 = scmp.ne.s32.totalorder %s286, %s288
      %p295 = scmp.eq.s32.totalorder %s28, 1
      %p296 = por %p294, %p295
      %p297 = scmp.ne.s32.totalorder %s288, %s289
      %p298 = scmp.eq.s32.totalorder %s28, 0
      %p299 = por %p297, %p298
      %p300 = scmp.ne.s32.totalorder %s288, %s289
      %p301 = scmp.eq.s32.totalorder %s29, 1
      %p302 = por %p300, %p301
      %p304 = scmp.ne.s32.totalorder %s289, %s303
      %p305 = scmp.eq.s32.totalorder %s29, 0
      %p306 = por %p304, %p305
      %s308 = sadd.s32 %s307, 1
      %p311 = scmp.eq.s32.totalorder %s23, 1
      %p312 = scmp.ne.s32.totalorder %s307, %s309
      %p313 = scmp.eq.s32.totalorder %s23, 0
      %p314 = por %p312, %p313
      %p315 = scmp.ne.s32.totalorder %s307, %s309
      %p316 = scmp.eq.s32.totalorder %s28, 1
      %p317 = por %p315, %p316
      %p318 = scmp.ne.s32.totalorder %s309, %s310
      %p319 = scmp.eq.s32.totalorder %s28, 0
      %p320 = por %p318, %p319
      %p321 = scmp.ne.s32.totalorder %s309, %s310
      %p322 = scmp.eq.s32.totalorder %s29, 1
      %p323 = por %p321, %p322
      %p325 = scmp.ne.s32.totalorder %s310, %s324
      %p326 = scmp.eq.s32.totalorder %s29, 0
      %p327 = por %p325, %p326
      %s329 = sadd.s32 %s328, 1
      %p332 = scmp.eq.s32.totalorder %s23, 1
      %p333 = scmp.ne.s32.totalorder %s328, %s330
      %p334 = scmp.eq.s32.totalorder %s23, 0
      %p335 = por %p333, %p334
      %p336 = scmp.ne.s32.totalorder %s328, %s330
      %p337 = scmp.eq.s32.totalorder %s28, 1
      %p338 = por %p336, %p337
      %p339 = scmp.ne.s32.totalorder %s330, %s331
      %p340 = scmp.eq.s32.totalorder %s28, 0
      %p341 = por %p339, %p340
      %p342 = scmp.ne.s32.totalorder %s330, %s331
      %p343 = scmp.eq.s32.totalorder %s29, 1
      %p344 = por %p342, %p343
      %p346 = scmp.ne.s32.totalorder %s331, %s345
      %p347 = scmp.eq.s32.totalorder %s29, 0
      %p348 = por %p346, %p347
      %s349 = ssub.s32 %s30, %s42
      %s350 = ssub.s32 %s31, %s38
      %s351 = sor.u32 %s349, %s350
      %p352 = scmp.eq.s32.totalorder %s351, 0
      %s354 = sadd.s32 %s353, 1
      %s355 = scalar_select %p352, %s353, %s354
      %p358 = pneg %p352
      %p359 = scmp.eq.s32.totalorder %s23, 1
      %p360 = por %p358, %p359
      %p361 = scmp.ne.s32.totalorder %s353, %s356
      %p362 = scmp.eq.s32.totalorder %s23, 0
      %p363 = por %p361, %p362
      %p364 = scmp.ne.s32.totalorder %s353, %s356
      %p365 = scmp.eq.s32.totalorder %s28, 1
      %p366 = por %p364, %p365
      %p367 = scmp.ne.s32.totalorder %s356, %s357
      %p368 = scmp.eq.s32.totalorder %s28, 0
      %p369 = por %p367, %p368
      %p370 = scmp.ne.s32.totalorder %s356, %s357
      %p371 = scmp.eq.s32.totalorder %s29, 1
      %p372 = por %p370, %p371
      %p374 = scmp.ne.s32.totalorder %s357, %s373
      %p375 = scmp.eq.s32.totalorder %s29, 0
      %p376 = por %p374, %p375
      %p377 = scmp.le.s32.totalorder 1, %s23
      %p378 = scmp.lt.s32.totalorder %s23, 3
      %p379 = pnand %p377, %p378
      %p380 = pneg %p379
      // Predicated region
      $region9: #{tpu_custom_call.1} parent=5 // pred_check
        _
      $region10: #{tpu_custom_call.1} parent=5 // pred_check_branch
        %382 = sbr.rel (%p379) target = $region12
      $region11: #{tpu_custom_call.1} parent=5 // pred_region
        %s383 = ssub.s32 %s23, 1
        // Predicated region
        $region13: #{tpu_custom_call.1} parent=11 // pred_check
          %p384 = pneg %p110
        $region14: #{tpu_custom_call.1} parent=11 // pred_check_branch
          %386 = sbr.rel (%p384) target = $region16
        $region15: #{tpu_custom_call.1} parent=11 // pred_region
          _
        $region16: #{tpu_custom_call.1} parent=11 // pred_fallthru
          _
        // Predicated region
        $region17: #{tpu_custom_call.1} parent=11 // pred_check
          %p387 = pneg %p131
        $region18: #{tpu_custom_call.1} parent=11 // pred_check_branch
          %389 = sbr.rel (%p387) target = $region20
        $region19: #{tpu_custom_call.1} parent=11 // pred_region
          _
        $region20: #{tpu_custom_call.1} parent=11 // pred_fallthru
          _
        // Predicated region
        $region21: #{tpu_custom_call.1} parent=11 // pred_check
          %p390 = pneg %p152
        $region22: #{tpu_custom_call.1} parent=11 // pred_check_branch
          %392 = sbr.rel (%p390) target = $region24
        $region23: #{tpu_custom_call.1} parent=11 // pred_region
          _
        $region24: #{tpu_custom_call.1} parent=11 // pred_fallthru
          _
        // Predicated region
        $region25: #{tpu_custom_call.1} parent=11 // pred_check
          %p393 = pneg %p173
        $region26: #{tpu_custom_call.1} parent=11 // pred_check_branch
          %395 = sbr.rel (%p393) target = $region28
        $region27: #{tpu_custom_call.1} parent=11 // pred_region
          _
        $region28: #{tpu_custom_call.1} parent=11 // pred_fallthru
          _
        // Predicated region
        $region29: #{tpu_custom_call.1} parent=11 // pred_check
          %p396 = pneg %p194
        $region30: #{tpu_custom_call.1} parent=11 // pred_check_branch
          %398 = sbr.rel (%p396) target = $region32
        $region31: #{tpu_custom_call.1} parent=11 // pred_region
          _
        $region32: #{tpu_custom_call.1} parent=11 // pred_fallthru
          _
        // Predicated region
        $region33: #{tpu_custom_call.1} parent=11 // pred_check
          %p399 = pneg %p215
        $region34: #{tpu_custom_call.1} parent=11 // pred_check_branch
          %401 = sbr.rel (%p399) target = $region36
        $region35: #{tpu_custom_call.1} parent=11 // pred_region
          _
        $region36: #{tpu_custom_call.1} parent=11 // pred_fallthru
          _
        // Predicated region
        $region37: #{tpu_custom_call.1} parent=11 // pred_check
          %p402 = pneg %p236
        $region38: #{tpu_custom_call.1} parent=11 // pred_check_branch
          %404 = sbr.rel (%p402) target = $region40
        $region39: #{tpu_custom_call.1} parent=11 // pred_region
          _
        $region40: #{tpu_custom_call.1} parent=11 // pred_fallthru
          _
        // Predicated region
        $region41: #{tpu_custom_call.1} parent=11 // pred_check
          %p405 = pneg %p257
        $region42: #{tpu_custom_call.1} parent=11 // pred_check_branch
          %407 = sbr.rel (%p405) target = $region44
        $region43: #{tpu_custom_call.1} parent=11 // pred_region
          _
        $region44: #{tpu_custom_call.1} parent=11 // pred_fallthru
          _
        // Predicated region
        $region45: #{tpu_custom_call.1} parent=11 // pred_check
          %p408 = pneg %p278
        $region46: #{tpu_custom_call.1} parent=11 // pred_check_branch
          %410 = sbr.rel (%p408) target = $region48
        $region47: #{tpu_custom_call.1} parent=11 // pred_region
          _
        $region48: #{tpu_custom_call.1} parent=11 // pred_fallthru
          _
        // Predicated region
        $region49: #{tpu_custom_call.1} parent=11 // pred_check
          %p411 = pneg %p299
        $region50: #{tpu_custom_call.1} parent=11 // pred_check_branch
          %413 = sbr.rel (%p411) target = $region52
        $region51: #{tpu_custom_call.1} parent=11 // pred_region
          _
        $region52: #{tpu_custom_call.1} parent=11 // pred_fallthru
          _
        // Predicated region
        $region53: #{tpu_custom_call.1} parent=11 // pred_check
          %p414 = pneg %p320
        $region54: #{tpu_custom_call.1} parent=11 // pred_check_branch
          %416 = sbr.rel (%p414) target = $region56
        $region55: #{tpu_custom_call.1} parent=11 // pred_region
          _
        $region56: #{tpu_custom_call.1} parent=11 // pred_fallthru
          _
        // Predicated region
        $region57: #{tpu_custom_call.1} parent=11 // pred_check
          %p417 = pneg %p341
        $region58: #{tpu_custom_call.1} parent=11 // pred_check_branch
          %419 = sbr.rel (%p417) target = $region60
        $region59: #{tpu_custom_call.1} parent=11 // pred_region
          _
        $region60: #{tpu_custom_call.1} parent=11 // pred_fallthru
          _
      $region12: #{tpu_custom_call.1} parent=5 // pred_fallthru
        _
      %p420 = scmp.lt.s32.totalorder %s23, 2
      // Predicated region
      $region61: #{tpu_custom_call.1} parent=5 // pred_check
        %p421 = pneg %p420
      $region62: #{tpu_custom_call.1} parent=5 // pred_check_branch
        %423 = sbr.rel (%p421) target = $region64
      $region63: #{tpu_custom_call.1} parent=5 // pred_region
        // Predicated region
        $region65: #{tpu_custom_call.1} parent=63 // pred_check
          %p424 = pneg %p55
        $region66: #{tpu_custom_call.1} parent=63 // pred_check_branch
          %426 = sbr.rel (%p424) target = $region68
        $region67: #{tpu_custom_call.1} parent=63 // pred_region
          %p427 = scmp.lt.s32.totalorder %s30, 1
          %s428 = scalar_select %p427, %s30, 1
          %s429 = smul.addr %s428, 4
          %s430 = scalar_lea.vmem %s0, %s429
        $region68: #{tpu_custom_call.1} parent=63 // pred_fallthru
          _
        // Predicated region
        $region69: #{tpu_custom_call.1} parent=63 // pred_check
          %p431 = pneg %p83
        $region70: #{tpu_custom_call.1} parent=63 // pred_check_branch
          %433 = sbr.rel (%p431) target = $region72
        $region71: #{tpu_custom_call.1} parent=63 // pred_region
          %p434 = scmp.lt.s32.totalorder %s30, 1
          %s435 = scalar_select %p434, %s30, 1
          %p436 = scmp.lt.s32.totalorder %s31, 0
          %s437 = scalar_select %p436, %s31, 0
          %s438 = sadd.s32 %s437, %s435
          %s439 = smul.addr %s438, 8
          %s440 = scalar_lea.vmem %s1, %s439
        $region72: #{tpu_custom_call.1} parent=63 // pred_fallthru
          _
      $region64: #{tpu_custom_call.1} parent=5 // pred_fallthru
        _
      %p441 = scmp.le.s32.totalorder 1, %s23
      %p442 = scmp.lt.s32.totalorder %s23, 3
      %p443 = pnand %p441, %p442
      %p444 = pneg %p443
      // Predicated region
      $region73: #{tpu_custom_call.1} parent=5 // pred_check
        _
      $region74: #{tpu_custom_call.1} parent=5 // pred_check_branch
        %446 = sbr.rel (%p443) target = $region76
      $region75: #{tpu_custom_call.1} parent=5 // pred_region
        %s447 = ssub.s32 %s23, 1
        %p448 = scmp.lt.s32.totalorder %s32, 1
        %s449 = scalar_select %p448, %s32, 1
        %s450 = smul.addr %s449, 4
        %s451 = scalar_lea.vmem %s0, %s450
        %p452 = pneg %p61
        %p453 = pneg %p58
        %p454 = scmp.lt.s32.totalorder %s32, 1
        %s455 = scalar_select %p454, %s32, 1
        %p456 = scmp.lt.s32.totalorder %s33, 0
        %s457 = scalar_select %p456, %s33, 0
        %s458 = sadd.s32 %s457, %s455
        %s459 = smul.addr %s458, 8
        %s460 = scalar_lea.vmem %s1, %s459
        %p461 = pneg %p89
        %p462 = pneg %p86
        %p463 = pneg %p110
        %p464 = pneg %p107
        %p465 = pneg %p131
        %p466 = pneg %p128
        %p467 = pneg %p152
        %p468 = pneg %p149
        %p469 = pneg %p173
        %p470 = pneg %p170
        %p471 = pneg %p194
        %p472 = pneg %p191
        %p473 = pneg %p215
        %p474 = pneg %p212
        %p475 = pneg %p236
        %p476 = pneg %p233
        %p477 = pneg %p257
        %p478 = pneg %p254
        %p479 = pneg %p278
        %p480 = pneg %p275
        %p481 = pneg %p299
        %p482 = pneg %p296
        %p483 = pneg %p320
        %p484 = pneg %p317
        %p485 = pneg %p341
        %p486 = pneg %p338
        %p487 = pneg %p369
        %p488 = pneg %p366
        %s489 = sand.u32 %s356, 1
        %s490 = scalar_lea.sflag [#allocation6], %s489
        %s491 = sand.u32 %s356, 1
        %s492 = smul.addr %s491, 8
        %s493 = scalar_lea.vmem [#allocation5], %s492
        %p494 = scmp.lt.s32.totalorder %s32, 1
        %s495 = scalar_select %p494, %s32, 1
        %s496 = smul.addr %s495, 4
        %s497 = scalar_lea.vmem %s0, %s496
        %p498 = scmp.lt.s32.totalorder %s32, 1
        %s499 = scalar_select %p498, %s32, 1
        %p500 = scmp.lt.s32.totalorder %s33, 0
        %s501 = scalar_select %p500, %s33, 0
        %s502 = sadd.s32 %s501, %s499
        %s503 = smul.addr %s502, 8
        %s504 = scalar_lea.vmem %s1, %s503
        %p506 = scmp.eq.s32.totalorder %s33, 0
        // Predicated region
        $region77: #{tpu_custom_call.1} parent=75 // pred_check
          %p507 = pneg %p506
        $region78: #{tpu_custom_call.1} parent=75 // pred_check_branch
          %509 = sbr.rel (%p507) target = $region80
        $region79: #{tpu_custom_call.1} parent=75 // pred_region
          %v510 = vld [vmem:[%s497] sm:$0xf]
          loop: start=0, step=1, limit=4
          $region81: #{tpu_custom_call.1} parent=79 // loop_pre_header
            _
          $region82: #{tpu_custom_call.1} parent=79 // loop_header
            %s512 = sphi 0, %s516
            %p513 = scmp.ge.s32.totalorder %s512, 4
          $region83: #{tpu_custom_call.1} parent=79 // loop_header_branch
            %515 = sbr.rel (%p513) target = $region87
          $region84: #{tpu_custom_call.1} parent=79 // loop_body
            %s517 = smul.u32 %s512, 4
            %s518 = smul.addr %s517, 4
            %s519 = scalar_lea.vmem %s3, %s518
            %v520 = vld [vmem:[%s519] sm:$0xf]
            %v521 = vld [vmem:[%s519 + $0x4] sm:$0xf]
            %v522 = vld [vmem:[%s519 + $0x8] sm:$0xf]
            %v523 = vld [vmem:[%s519 + $0xc] sm:$0xf]
            %v528 = vunpack.c.l.b16 %v520
            %v529 = vunpack.c.l.b16 %v521
            %v530 = vunpack.c.l.b16 %v522
            %v531 = vunpack.c.l.b16 %v523
            %v532 = vpack.c.b16 %v529, %v528
            %v533 = vpack.c.b16 %v531, %v530
            %vm536 = vcmask 261120
            %v538 = vsel %vm536, %v510, 0
            %540 = vmatprep.subr.bf16.mxu0 0
            %541 = vmatpush1.bf16.msra.mxu0 0
            %542 = vmatprep.subr.bf16.mxu0 0
            %543 = vmatpush1.bf16.msra.mxu0 0
            %544 = vmatprep.subr.bf16.mxu0 0
            %545 = vmatpush1.bf16.msra.mxu0 0
            %546 = vmatprep.subr.bf16.mxu0 0
            %547 = vmatpush1.bf16.msra.mxu0 0
            %548 = vmatprep.subr.bf16.mxu0 0
            %549 = vmatpush1.bf16.msra.mxu0 0
            %550 = vmatprep.subr.bf16.mxu0 0
            %551 = vmatpush1.bf16.msra.mxu0 0
            %552 = vmatprep.subr.bf16.mxu0 0
            %553 = vmatpush1.bf16.msra.mxu0 %v533
            %554 = vmatprep.subr.bf16.mxu0 0
            %555 = vmatpush1.bf16.msra.mxu0 %v532
            %556 = vmatprep.subr.bf16.mxu0 0
            %557 = vmatpush2.bf16.msra.mxu0 0
            %558 = vmatprep.subr.bf16.mxu0 0
            %559 = vmatpush2.bf16.msra.mxu0 0
            %560 = vmatprep.subr.bf16.mxu0 0
            %561 = vmatpush2.bf16.msra.mxu0 0
            %562 = vmatprep.subr.bf16.mxu0 0
            %563 = vmatpush2.bf16.msra.mxu0 0
            %564 = vmatprep.subr.bf16.mxu0 0
            %565 = vmatpush2.bf16.msra.mxu0 0
            %566 = vmatprep.subr.bf16.mxu0 0
            %567 = vmatpush2.bf16.msra.mxu0 0
            %568 = vmatprep.subr.bf16.mxu0 0
            %569 = vmatpush2.bf16.msra.mxu0 0
            %570 = vmatprep.subr.bf16.mxu0 0
            %571 = vmatpush2.bf16.msra.mxu0 0
            %572 = vmatprep.mubr.bf16.mxu0 0
            %573 = vmatmul.mubr.bf16.gmra.mxu0 %v538
            %v574 = vpop.f32.mrf.mxu0
            %v575 = vadd.f32 0.0, %v574
            %v576 = vpop.f32.mrf.mxu0
            %v577 = vpop.f32.mrf.mxu0
            %v578 = vpop.f32.mrf.mxu0
            %579 = vdwg.mxu0
            %v580 = vpack.c.bf16 %v575, %v575
            %s581 = smul.addr %s512, 4
            %s582 = scalar_lea.vmem [#allocation2], %s581
            %vm583 = vcmask 60416
            %584 = vst.msk [vmem:[%s582] sm:$0xf] %vm583, %v580
            %s585 = smul.addr %s517, 4
            %s586 = scalar_lea.vmem %s4, %s585
            %v587 = vld [vmem:[%s586] sm:$0xf]
            %v588 = vld [vmem:[%s586 + $0x4] sm:$0xf]
            %v589 = vld [vmem:[%s586 + $0x8] sm:$0xf]
            %v590 = vld [vmem:[%s586 + $0xc] sm:$0xf]
            %v595 = vunpack.c.l.b16 %v587
            %v596 = vunpack.c.l.b16 %v588
            %v597 = vunpack.c.l.b16 %v589
            %v598 = vunpack.c.l.b16 %v590
            %v599 = vpack.c.b16 %v596, %v595
            %v600 = vpack.c.b16 %v598, %v597
            %603 = vmatprep.subr.bf16.mxu0 0
            %604 = vmatpush1.bf16.msra.mxu0 0
            %605 = vmatprep.subr.bf16.mxu0 0
            %606 = vmatpush1.bf16.msra.mxu0 0
            %607 = vmatprep.subr.bf16.mxu0 0
            %608 = vmatpush1.bf16.msra.mxu0 0
            %609 = vmatprep.subr.bf16.mxu0 0
            %610 = vmatpush1.bf16.msra.mxu0 0
            %611 = vmatprep.subr.bf16.mxu0 0
            %612 = vmatpush1.bf16.msra.mxu0 0
            %613 = vmatprep.subr.bf16.mxu0 0
            %614 = vmatpush1.bf16.msra.mxu0 0
            %615 = vmatprep.subr.bf16.mxu0 0
            %616 = vmatpush1.bf16.msra.mxu0 %v600
            %617 = vmatprep.subr.bf16.mxu0 0
            %618 = vmatpush1.bf16.msra.mxu0 %v599
            %619 = vmatprep.subr.bf16.mxu0 0
            %620 = vmatpush2.bf16.msra.mxu0 0
            %621 = vmatprep.subr.bf16.mxu0 0
            %622 = vmatpush2.bf16.msra.mxu0 0
            %623 = vmatprep.subr.bf16.mxu0 0
            %624 = vmatpush2.bf16.msra.mxu0 0
            %625 = vmatprep.subr.bf16.mxu0 0
            %626 = vmatpush2.bf16.msra.mxu0 0
            %627 = vmatprep.subr.bf16.mxu0 0
            %628 = vmatpush2.bf16.msra.mxu0 0
            %629 = vmatprep.subr.bf16.mxu0 0
            %630 = vmatpush2.bf16.msra.mxu0 0
            %631 = vmatprep.subr.bf16.mxu0 0
            %632 = vmatpush2.bf16.msra.mxu0 0
            %633 = vmatprep.subr.bf16.mxu0 0
            %634 = vmatpush2.bf16.msra.mxu0 0
            %635 = vmatprep.mubr.bf16.mxu0 0
            %636 = vmatmul.mubr.bf16.gmra.mxu0 %v538
            %v637 = vpop.f32.mrf.mxu0
            %v638 = vadd.f32 0.0, %v637
            %v639 = vpop.f32.mrf.mxu0
            %v640 = vpop.f32.mrf.mxu0
            %v641 = vpop.f32.mrf.mxu0
            %642 = vdwg.mxu0
            %v643 = vpack.c.bf16 %v638, %v638
            %s644 = smul.addr %s512, 4
            %s645 = scalar_lea.vmem [#allocation3], %s644
            %646 = vst.msk [vmem:[%s645] sm:$0xf] %vm583, %v643
          $region85: #{tpu_custom_call.1} parent=79 // loop_footer
            %s516 = sadd.s32 1, %s512
          $region86: #{tpu_custom_call.1} parent=79 // loop_footer_branch
            %511 = sbr.rel target = $region82
          $region87: #{tpu_custom_call.1} parent=79 // loop_exit
            _
        $region80: #{tpu_custom_call.1} parent=75 // pred_fallthru
          _
        %v647 = vld [vmem:[%s504] sm:$0xff]
        %v648 = vpack.c.bf16 %v647, %v647
        %vm649 = vcmask 261120
        %650 = vst.msk [vmem:[#allocation4] sm:$0xff] %vm649, 0.0
        loop: start=0, step=1, limit=4
        $region88: #{tpu_custom_call.1} parent=75 // loop_pre_header
          _
        $region89: #{tpu_custom_call.1} parent=75 // loop_header
          %s652 = sphi 0, %s656
          %p653 = scmp.ge.s32.totalorder %s652, 4
        $region90: #{tpu_custom_call.1} parent=75 // loop_header_branch
          %655 = sbr.rel (%p653) target = $region94
        $region91: #{tpu_custom_call.1} parent=75 // loop_body
          %s657 = smul.u32 %s652, 4
          %s658 = smul.addr %s657, 4
          %s659 = scalar_lea.vmem %s2, %s658
          %v660 = vld [vmem:[%s659] sm:$0xf]
          %v661 = vld [vmem:[%s659 + $0x4] sm:$0xf]
          %v662 = vld [vmem:[%s659 + $0x8] sm:$0xf]
          %v663 = vld [vmem:[%s659 + $0xc] sm:$0xf]
          %v668 = vunpack.c.l.b16 %v660
          %v669 = vunpack.c.l.b16 %v661
          %v670 = vunpack.c.l.b16 %v662
          %v671 = vunpack.c.l.b16 %v663
          %v672 = vpack.c.b16 %v669, %v668
          %v673 = vpack.c.b16 %v671, %v670
          %v677 = vsel %vm649, %v648, 0
          %679 = vmatprep.subr.bf16.mxu0 0
          %680 = vmatpush1.bf16.msra.mxu0 0
          %681 = vmatprep.subr.bf16.mxu0 0
          %682 = vmatpush1.bf16.msra.mxu0 0
          %683 = vmatprep.subr.bf16.mxu0 0
          %684 = vmatpush1.bf16.msra.mxu0 0
          %685 = vmatprep.subr.bf16.mxu0 0
          %686 = vmatpush1.bf16.msra.mxu0 0
          %687 = vmatprep.subr.bf16.mxu0 0
          %688 = vmatpush1.bf16.msra.mxu0 0
          %689 = vmatprep.subr.bf16.mxu0 0
          %690 = vmatpush1.bf16.msra.mxu0 0
          %691 = vmatprep.subr.bf16.mxu0 0
          %692 = vmatpush1.bf16.msra.mxu0 %v673
          %693 = vmatprep.subr.bf16.mxu0 0
          %694 = vmatpush1.bf16.msra.mxu0 %v672
          %695 = vmatprep.subr.bf16.mxu0 0
          %696 = vmatpush2.bf16.msra.mxu0 0
          %697 = vmatprep.subr.bf16.mxu0 0
          %698 = vmatpush2.bf16.msra.mxu0 0
          %699 = vmatprep.subr.bf16.mxu0 0
          %700 = vmatpush2.bf16.msra.mxu0 0
          %701 = vmatprep.subr.bf16.mxu0 0
          %702 = vmatpush2.bf16.msra.mxu0 0
          %703 = vmatprep.subr.bf16.mxu0 0
          %704 = vmatpush2.bf16.msra.mxu0 0
          %705 = vmatprep.subr.bf16.mxu0 0
          %706 = vmatpush2.bf16.msra.mxu0 0
          %707 = vmatprep.subr.bf16.mxu0 0
          %708 = vmatpush2.bf16.msra.mxu0 0
          %709 = vmatprep.subr.bf16.mxu0 0
          %710 = vmatpush2.bf16.msra.mxu0 0
          %711 = vmatprep.mubr.bf16.mxu0 0
          %712 = vmatmul.mubr.bf16.gmra.mxu0 %v677
          %v713 = vpop.f32.mrf.mxu0
          %v714 = vadd.f32 0.0, %v713
          %v715 = vpop.f32.mrf.mxu0
          %v716 = vpop.f32.mrf.mxu0
          %v717 = vpop.f32.mrf.mxu0
          %718 = vdwg.mxu0
          %v719 = vpack.c.bf16 %v714, %v714
          %s720 = smul.addr %s652, 4
          %s721 = scalar_lea.vmem [#allocation2], %s720
          %v722 = vld [vmem:[%s721] sm:$0xf]
          %vm723 = vcmask 64512
          %v725 = vsel %vm723, %v719, 0
          %v728 = vsel %vm723, %v722, 0
          %730 = vmatprep.subr.bf16.mxu0 0
          %731 = vmatpush1.bf16.xpose.msra.mxu0 0
          %732 = vmatprep.subr.bf16.mxu0 0
          %733 = vmatpush1.bf16.xpose.msra.mxu0 0
          %734 = vmatprep.subr.bf16.mxu0 0
          %735 = vmatpush1.bf16.xpose.msra.mxu0 0
          %736 = vmatprep.subr.bf16.mxu0 0
          %737 = vmatpush1.bf16.xpose.msra.mxu0 0
          %738 = vmatprep.subr.bf16.mxu0 0
          %739 = vmatpush1.bf16.xpose.msra.mxu0 0
          %740 = vmatprep.subr.bf16.mxu0 0
          %741 = vmatpush1.bf16.xpose.msra.mxu0 0
          %742 = vmatprep.subr.bf16.mxu0 0
          %743 = vmatpush1.bf16.xpose.msra.mxu0 0
          %744 = vmatprep.subr.bf16.mxu0 0
          %745 = vmatpush1.bf16.xpose.msra.mxu0 %v728
          %746 = vmatprep.subr.bf16.mxu0 0
          %747 = vmatpush2.bf16.xpose.msra.mxu0 0
          %748 = vmatprep.subr.bf16.mxu0 0
          %749 = vmatpush2.bf16.xpose.msra.mxu0 0
          %750 = vmatprep.subr.bf16.mxu0 0
          %751 = vmatpush2.bf16.xpose.msra.mxu0 0
          %752 = vmatprep.subr.bf16.mxu0 0
          %753 = vmatpush2.bf16.xpose.msra.mxu0 0
          %754 = vmatprep.subr.bf16.mxu0 0
          %755 = vmatpush2.bf16.xpose.msra.mxu0 0
          %756 = vmatprep.subr.bf16.mxu0 0
          %757 = vmatpush2.bf16.xpose.msra.mxu0 0
          %758 = vmatprep.subr.bf16.mxu0 0
          %759 = vmatpush2.bf16.xpose.msra.mxu0 0
          %760 = vmatprep.subr.bf16.mxu0 0
          %761 = vmatpush2.bf16.xpose.msra.mxu0 0
          %762 = vmatprep.mubr.bf16.mxu0 0
          %763 = vmatmul.mubr.bf16.gmra.mxu0 %v725
          %v764 = vpop.f32.mrf.mxu0
          %v765 = vadd.f32 0.0, %v764
          %v766 = vpop.f32.mrf.mxu0
          %v767 = vpop.f32.mrf.mxu0
          %v768 = vpop.f32.mrf.mxu0
          %769 = vdwg.mxu0
          %v770 = vsel %vm723, %v765, -inf
          %771 = vmax.xlane.f32.xlu0 %v770
          %v772 = vpop.xlane.xlu0 %771
          %v773 = vsub.f32 %v765, %v772
          %v774 = vmul.f32 %v773, 1.442695
          %v775 = vpow.pop %v774
          %v776 = vsel %vm723, %v775, 0.0
          %777 = vadd.xlane.f32.xlu0 %v776
          %v778 = vpop.xlane.xlu0 %777
          %v779 = vrcp.pop %v778
          %v780 = vmul.f32 %v775, %v779
          %v781 = vpack.c.bf16 %v780, %v780
          %s782 = smul.addr %s652, 4
          %s783 = scalar_lea.vmem [#allocation3], %s782
          %v784 = vld [vmem:[%s783] sm:$0xf]
          %v786 = vsel %vm723, %v781, 0
          %vm788 = vcmask 1043456
          %v790 = vsel %vm788, %v784, 0
          %792 = vmatprep.subr.bf16.mxu0 0
          %793 = vmatpush1.bf16.msra.mxu0 0
          %794 = vmatprep.subr.bf16.mxu0 0
          %795 = vmatpush1.bf16.msra.mxu0 0
          %796 = vmatprep.subr.bf16.mxu0 0
          %797 = vmatpush1.bf16.msra.mxu0 0
          %798 = vmatprep.subr.bf16.mxu0 0
          %799 = vmatpush1.bf16.msra.mxu0 0
          %800 = vmatprep.subr.bf16.mxu0 0
          %801 = vmatpush1.bf16.msra.mxu0 0
          %802 = vmatprep.subr.bf16.mxu0 0
          %803 = vmatpush1.bf16.msra.mxu0 0
          %804 = vmatprep.subr.bf16.mxu0 0
          %805 = vmatpush1.bf16.msra.mxu0 0
          %806 = vmatprep.subr.bf16.mxu0 0
          %807 = vmatpush1.bf16.msra.mxu0 %v790
          %808 = vmatprep.subr.bf16.mxu0 0
          %809 = vmatpush2.bf16.msra.mxu0 0
          %810 = vmatprep.subr.bf16.mxu0 0
          %811 = vmatpush2.bf16.msra.mxu0 0
          %812 = vmatprep.subr.bf16.mxu0 0
          %813 = vmatpush2.bf16.msra.mxu0 0
          %814 = vmatprep.subr.bf16.mxu0 0
          %815 = vmatpush2.bf16.msra.mxu0 0
          %816 = vmatprep.subr.bf16.mxu0 0
          %817 = vmatpush2.bf16.msra.mxu0 0
          %818 = vmatprep.subr.bf16.mxu0 0
          %819 = vmatpush2.bf16.msra.mxu0 0
          %820 = vmatprep.subr.bf16.mxu0 0
          %821 = vmatpush2.bf16.msra.mxu0 0
          %822 = vmatprep.subr.bf16.mxu0 0
          %823 = vmatpush2.bf16.msra.mxu0 0
          %824 = vmatprep.mubr.bf16.mxu0 0
          %825 = vmatmul.mubr.bf16.gmra.mxu0 %v786
          %v826 = vpop.f32.mrf.mxu0
          %v827 = vadd.f32 0.0, %v826
          %v828 = vpop.f32.mrf.mxu0
          %v829 = vpop.f32.mrf.mxu0
          %v830 = vpop.f32.mrf.mxu0
          %831 = vdwg.mxu0
          %v832 = vpack.c.bf16 %v827, %v827
          %v833 = vld [vmem:[#allocation4] sm:$0xff]
          %s834 = smul.addr %s652, 4
          %s835 = scalar_lea.vmem %s5, %s834
          %v836 = vld [vmem:[%s835] sm:$0xf]
          %v838 = vsel %vm723, %v832, 0
          %v841 = vsel %vm788, %v836, 0
          %843 = vmatprep.subr.bf16.mxu0 0
          %844 = vmatpush1.bf16.msra.mxu0 0
          %845 = vmatprep.subr.bf16.mxu0 0
          %846 = vmatpush1.bf16.msra.mxu0 0
          %847 = vmatprep.subr.bf16.mxu0 0
          %848 = vmatpush1.bf16.msra.mxu0 0
          %849 = vmatprep.subr.bf16.mxu0 0
          %850 = vmatpush1.bf16.msra.mxu0 0
          %851 = vmatprep.subr.bf16.mxu0 0
          %852 = vmatpush1.bf16.msra.mxu0 0
          %853 = vmatprep.subr.bf16.mxu0 0
          %854 = vmatpush1.bf16.msra.mxu0 0
          %855 = vmatprep.subr.bf16.mxu0 0
          %856 = vmatpush1.bf16.msra.mxu0 0
          %857 = vmatprep.subr.bf16.mxu0 0
          %858 = vmatpush1.bf16.msra.mxu0 %v841
          %859 = vmatprep.subr.bf16.mxu0 0
          %860 = vmatpush2.bf16.msra.mxu0 0
          %861 = vmatprep.subr.bf16.mxu0 0
          %862 = vmatpush2.bf16.msra.mxu0 0
          %863 = vmatprep.subr.bf16.mxu0 0
          %864 = vmatpush2.bf16.msra.mxu0 0
          %865 = vmatprep.subr.bf16.mxu0 0
          %866 = vmatpush2.bf16.msra.mxu0 0
          %867 = vmatprep.subr.bf16.mxu0 0
          %868 = vmatpush2.bf16.msra.mxu0 0
          %869 = vmatprep.subr.bf16.mxu0 0
          %870 = vmatpush2.bf16.msra.mxu0 0
          %871 = vmatprep.subr.bf16.mxu0 0
          %872 = vmatpush2.bf16.msra.mxu0 0
          %873 = vmatprep.subr.bf16.mxu0 0
          %874 = vmatpush2.bf16.msra.mxu0 0
          %875 = vmatprep.mubr.bf16.mxu0 0
          %876 = vmatmul.mubr.bf16.gmra.mxu0 %v838
          %v877 = vpop.f32.mrf.mxu0
          %v878 = vadd.f32 0.0, %v877
          %v879 = vpop.f32.mrf.mxu0
          %v880 = vpop.f32.mrf.mxu0
          %v881 = vpop.f32.mrf.mxu0
          %882 = vdwg.mxu0
          %v883 = vadd.f32 %v833, %v878
          %884 = vst.msk [vmem:[#allocation4] sm:$0xff] %vm649, %v883
        $region92: #{tpu_custom_call.1} parent=75 // loop_footer
          %s656 = sadd.s32 1, %s652
        $region93: #{tpu_custom_call.1} parent=75 // loop_footer_branch
          %651 = sbr.rel target = $region89
        $region94: #{tpu_custom_call.1} parent=75 // loop_exit
          _
        %v885 = vld [vmem:[#allocation4] sm:$0xff]
        %v886 = vadd.f32 %v647, %v885
        %v887 = vld [vmem:[%s10] sm:$0x1]
        %v888 = vld [vmem:[%s11] sm:$0x1]
        %v889 = vsel %vm649, %v886, 0.0
        %890 = vadd.xlane.f32.xlu0 %v889
        %v891 = vpop.xlane.xlu0 %890
        %v892 = vrcp.pop 32.0
        %v893 = vmul.f32 %v891, %v892
        %v894 = vsub.f32 %v886, %v893
        %v895 = vmul.f32 %v894, %v894
        %v896 = vsel %vm649, %v895, 0.0
        %897 = vadd.xlane.f32.xlu0 %v896
        %v898 = vpop.xlane.xlu0 %897
        %v899 = vmul.f32 %v898, %v892
        %v900 = vadd.f32 %v899, 1e-05
        %v901 = vrsqrt.pop %v900
        %v902 = vmul.f32 %v894, %v901
        %v904 = vlaneseq
        %v905 = vshrl.u32 %v904, 7
        %v906 = vsub.s32 0, %v905
        %v907 = vrot.slane %v887, %v906
        %v909 = vmul.f32 %v902, %v907
        %v911 = vlaneseq
        %v912 = vshrl.u32 %v911, 7
        %v913 = vsub.s32 0, %v912
        %v914 = vrot.slane %v888, %v913
        %v916 = vadd.f32 %v909, %v914
        %v917 = vpack.c.bf16 %v916, %v916
        %918 = vst.msk [vmem:[#allocation4] sm:$0xff] %vm649, 0.0
        %v919 = vld [vmem:[%s6] sm:$0xf]
        %v920 = vld [vmem:[%s6 + $0x4] sm:$0xf]
        %v921 = vld [vmem:[%s6 + $0x8] sm:$0xf]
        %v922 = vld [vmem:[%s6 + $0xc] sm:$0xf]
        %v923 = vld [vmem:[%s7] sm:$0x1]
        %v925 = vlaneseq
        %v926 = vshrl.u32 %v925, 7
        %v927 = vsub.s32 0, %v926
        %v928 = vrot.slane %v923, %v927
        %v934 = vunpack.c.l.b16 %v919
        %v935 = vunpack.c.l.b16 %v920
        %v936 = vunpack.c.l.b16 %v921
        %v937 = vunpack.c.l.b16 %v922
        %v938 = vpack.c.b16 %v935, %v934
        %v939 = vpack.c.b16 %v937, %v936
        %v943 = vsel %vm649, %v917, 0
        %945 = vmatprep.subr.bf16.mxu0 0
        %946 = vmatpush1.bf16.msra.mxu0 0
        %947 = vmatprep.subr.bf16.mxu0 0
        %948 = vmatpush1.bf16.msra.mxu0 0
        %949 = vmatprep.subr.bf16.mxu0 0
        %950 = vmatpush1.bf16.msra.mxu0 0
        %951 = vmatprep.subr.bf16.mxu0 0
        %952 = vmatpush1.bf16.msra.mxu0 0
        %953 = vmatprep.subr.bf16.mxu0 0
        %954 = vmatpush1.bf16.msra.mxu0 0
        %955 = vmatprep.subr.bf16.mxu0 0
        %956 = vmatpush1.bf16.msra.mxu0 0
        %957 = vmatprep.subr.bf16.mxu0 0
        %958 = vmatpush1.bf16.msra.mxu0 %v939
        %959 = vmatprep.subr.bf16.mxu0 0
        %960 = vmatpush1.bf16.msra.mxu0 %v938
        %961 = vmatprep.subr.bf16.mxu0 0
        %962 = vmatpush2.bf16.msra.mxu0 0
        %963 = vmatprep.subr.bf16.mxu0 0
        %964 = vmatpush2.bf16.msra.mxu0 0
        %965 = vmatprep.subr.bf16.mxu0 0
        %966 = vmatpush2.bf16.msra.mxu0 0
        %967 = vmatprep.subr.bf16.mxu0 0
        %968 = vmatpush2.bf16.msra.mxu0 0
        %969 = vmatprep.subr.bf16.mxu0 0
        %970 = vmatpush2.bf16.msra.mxu0 0
        %971 = vmatprep.subr.bf16.mxu0 0
        %972 = vmatpush2.bf16.msra.mxu0 0
        %973 = vmatprep.subr.bf16.mxu0 0
        %974 = vmatpush2.bf16.msra.mxu0 0
        %975 = vmatprep.subr.bf16.mxu0 0
        %976 = vmatpush2.bf16.msra.mxu0 0
        %977 = vmatprep.mubr.bf16.mxu0 0
        %978 = vmatmul.mubr.bf16.gmra.mxu0 %v943
        %v979 = vpop.f32.mrf.mxu0
        %v980 = vadd.f32 %v928, %v979
        %v981 = vpop.f32.mrf.mxu0
        %v982 = vpop.f32.mrf.mxu0
        %v983 = vpop.f32.mrf.mxu0
        %984 = vdwg.mxu0
        %v985 = vmax.f32 %v980, 0.0
        %v986 = vpack.c.bf16 %v985, %v985
        %v987 = vld [vmem:[#allocation4] sm:$0xff]
        %v988 = vld [vmem:[%s8] sm:$0xf]
        %v989 = vld [vmem:[%s8 + $0x4] sm:$0xf]
        %v990 = vld [vmem:[%s8 + $0x8] sm:$0xf]
        %v991 = vld [vmem:[%s8 + $0xc] sm:$0xf]
        %v992 = vld [vmem:[%s8 + $0x10] sm:$0xf]
        %v993 = vld [vmem:[%s8 + $0x14] sm:$0xf]
        %v994 = vld [vmem:[%s8 + $0x18] sm:$0xf]
        %v995 = vld [vmem:[%s8 + $0x1c] sm:$0xf]
        %v1004 = vunpack.c.l.b16 %v988
        %v1005 = vunpack.c.l.b16 %v989
        %v1006 = vunpack.c.l.b16 %v990
        %v1007 = vunpack.c.l.b16 %v991
        %v1008 = vunpack.c.l.b16 %v992
        %v1009 = vunpack.c.l.b16 %v993
        %v1010 = vunpack.c.l.b16 %v994
        %v1011 = vunpack.c.l.b16 %v995
        %v1012 = vpack.c.b16 %v1005, %v1004
        %v1013 = vpack.c.b16 %v1007, %v1006
        %v1014 = vpack.c.b16 %v1009, %v1008
        %v1015 = vpack.c.b16 %v1011, %v1010
        %vm1020 = vcmask 523264
        %v1022 = vsel %vm1020, %v986, 0
        %1024 = vmatprep.subr.bf16.mxu0 0
        %1025 = vmatpush1.bf16.msra.mxu0 0
        %1026 = vmatprep.subr.bf16.mxu0 0
        %1027 = vmatpush1.bf16.msra.mxu0 0
        %1028 = vmatprep.subr.bf16.mxu0 0
        %1029 = vmatpush1.bf16.msra.mxu0 0
        %1030 = vmatprep.subr.bf16.mxu0 0
        %1031 = vmatpush1.bf16.msra.mxu0 0
        %1032 = vmatprep.subr.bf16.mxu0 0
        %1033 = vmatpush1.bf16.msra.mxu0 %v1015
        %1034 = vmatprep.subr.bf16.mxu0 0
        %1035 = vmatpush1.bf16.msra.mxu0 %v1014
        %1036 = vmatprep.subr.bf16.mxu0 0
        %1037 = vmatpush1.bf16.msra.mxu0 %v1013
        %1038 = vmatprep.subr.bf16.mxu0 0
        %1039 = vmatpush1.bf16.msra.mxu0 %v1012
        %1040 = vmatprep.subr.bf16.mxu0 0
        %1041 = vmatpush2.bf16.msra.mxu0 0
        %1042 = vmatprep.subr.bf16.mxu0 0
        %1043 = vmatpush2.bf16.msra.mxu0 0
        %1044 = vmatprep.subr.bf16.mxu0 0
        %1045 = vmatpush2.bf16.msra.mxu0 0
        %1046 = vmatprep.subr.bf16.mxu0 0
        %1047 = vmatpush2.bf16.msra.mxu0 0
        %1048 = vmatprep.subr.bf16.mxu0 0
        %1049 = vmatpush2.bf16.msra.mxu0 0
        %1050 = vmatprep.subr.bf16.mxu0 0
        %1051 = vmatpush2.bf16.msra.mxu0 0
        %1052 = vmatprep.subr.bf16.mxu0 0
        %1053 = vmatpush2.bf16.msra.mxu0 0
        %1054 = vmatprep.subr.bf16.mxu0 0
        %1055 = vmatpush2.bf16.msra.mxu0 0
        %1056 = vmatprep.mubr.bf16.mxu0 0
        %1057 = vmatmul.mubr.bf16.gmra.mxu0 %v1022
        %v1058 = vpop.f32.mrf.mxu0
        %v1059 = vadd.f32 0.0, %v1058
        %v1060 = vpop.f32.mrf.mxu0
        %v1061 = vpop.f32.mrf.mxu0
        %v1062 = vpop.f32.mrf.mxu0
        %1063 = vdwg.mxu0
        %v1064 = vadd.f32 %v987, %v1059
        %1065 = vst.msk [vmem:[#allocation4] sm:$0xff] %vm649, %v1064
        %v1066 = vld [vmem:[#allocation4] sm:$0xff]
        %v1067 = vld [vmem:[%s9] sm:$0x1]
        %v1069 = vlaneseq
        %v1070 = vshrl.u32 %v1069, 7
        %v1071 = vsub.s32 0, %v1070
        %v1072 = vrot.slane %v1067, %v1071
        %v1074 = vadd.f32 %v1066, %v1072
        %v1075 = vadd.f32 %v916, %v1074
        %v1076 = vld [vmem:[%s12] sm:$0x1]
        %v1077 = vld [vmem:[%s13] sm:$0x1]
        %v1078 = vsel %vm649, %v1075, 0.0
        %1079 = vadd.xlane.f32.xlu0 %v1078
        %v1080 = vpop.xlane.xlu0 %1079
        %v1081 = vmul.f32 %v1080, %v892
        %v1082 = vsub.f32 %v1075, %v1081
        %v1083 = vmul.f32 %v1082, %v1082
        %v1084 = vsel %vm649, %v1083, 0.0
        %1085 = vadd.xlane.f32.xlu0 %v1084
        %v1086 = vpop.xlane.xlu0 %1085
        %v1087 = vmul.f32 %v1086, %v892
        %v1088 = vadd.f32 %v1087, 1e-05
        %v1089 = vrsqrt.pop %v1088
        %v1090 = vmul.f32 %v1082, %v1089
        %v1092 = vlaneseq
        %v1093 = vshrl.u32 %v1092, 7
        %v1094 = vsub.s32 0, %v1093
        %v1095 = vrot.slane %v1076, %v1094
        %v1097 = vmul.f32 %v1090, %v1095
        %v1099 = vlaneseq
        %v1100 = vshrl.u32 %v1099, 7
        %v1101 = vsub.s32 0, %v1100
        %v1102 = vrot.slane %v1077, %v1101
        %v1104 = vadd.f32 %v1097, %v1102
        %1105 = vst.msk [vmem:[%s493] sm:$0xff] %vm649, %v1104
        %s1106 = sand.u32 %s356, 1
        %s1107 = scalar_lea.sflag [#allocation6], %s1106
        %s1108 = sand.u32 %s356, 1
        %s1109 = smul.addr %s1108, 8
        %s1110 = scalar_lea.vmem [#allocation5], %s1109
        // Predicated region
        $region95: #{tpu_custom_call.1} parent=75 // pred_check
          %p1111 = pneg %p366
        $region96: #{tpu_custom_call.1} parent=75 // pred_check_branch
          %1113 = sbr.rel (%p1111) target = $region98
        $region97: #{tpu_custom_call.1} parent=75 // pred_region
          %s1115 = ssub.s32 128, 128
          %1116 = vsyncadd %s1107, %s1115
          %s1117 = sadd.s32 %s33, %s32
          %s1118 = smul.addr %s1117, 128
          %s1119 = scalar_lea.hbm %s14, %s1118
          %s1121 = sshll.u32 %s1110, 4
          %s1122 = int_to_ptr.vmem [resolvable:$true] %s1121
          %1124 = dma.vmem_to_hbm [thread:$0]  %s1122, 128, %s1119, %s1107
        $region98: #{tpu_custom_call.1} parent=75 // pred_fallthru
          _
      $region76: #{tpu_custom_call.1} parent=5 // pred_fallthru
        _
      %p1125 = scmp.le.s32.totalorder 2, %s23
      // Predicated region
      $region99: #{tpu_custom_call.1} parent=5 // pred_check
        %p1126 = pneg %p1125
      $region100: #{tpu_custom_call.1} parent=5 // pred_check_branch
        %1128 = sbr.rel (%p1126) target = $region102
      $region101: #{tpu_custom_call.1} parent=5 // pred_region
        %s1129 = ssub.s32 %s23, 2
        // Predicated region
        $region103: #{tpu_custom_call.1} parent=101 // pred_check
          %p1130 = pneg %p372
        $region104: #{tpu_custom_call.1} parent=101 // pred_check_branch
          %1132 = sbr.rel (%p1130) target = $region106
        $region105: #{tpu_custom_call.1} parent=101 // pred_region
          %s1133 = sand.u32 %s357, 1
          %s1134 = scalar_lea.sflag [#allocation6], %s1133
          %s1135 = sand.u32 %s357, 1
          %s1136 = smul.addr %s1135, 8
          %s1137 = scalar_lea.vmem [#allocation5], %s1136
          %1138 = dma.done %s1134, 128
        $region106: #{tpu_custom_call.1} parent=101 // pred_fallthru
          _
      $region102: #{tpu_custom_call.1} parent=5 // pred_fallthru
        _
    $region6: #{tpu_custom_call.1} parent=1 // loop_footer
      %s27 = sadd.s32 1, %s23
    $region7: #{tpu_custom_call.1} parent=1 // loop_footer_branch
      %22 = sbr.rel target = $region3
    $region8: #{tpu_custom_call.1} parent=1 // loop_exit
      _
    %1139 = vsyncpa [#allocation6], 1
    %s1140 = scalar_lea.sflag [#allocation6], 1
    %1141 = vsyncpa %s1140, 1

</llo_original>
